<compile_context>
chip_gen: v7x
topology: tpu7x:2x2x1
jax: 0.10.0
libtpu: 0.0.40
codegen_flags: <defaults>
</compile_context>

<pallas_src>
import jax
import jax.numpy as jnp
from jax.experimental import pallas as pl
from jax.experimental.pallas import tpu as pltpu

K_PAD = 256  # conv2 im2col K dim (3 * planes = 192) padded to a lane-dense 256


def se_bottleneck_kernel(
    x_ref,               # (Bblk, H, W, Cin) bf16, Cin == C4 (identity residual)
    w1_ref, b1_ref,      # (Cin, P) bf16 (BN1 scale folded in), (1, P) f32 bias
    w2_ref, b2_ref,      # (3, K_PAD, P) bf16 (ky major, kx stacked + zero-padded in K)
    w3_ref, b3_ref,      # (P, C4) bf16 (BN3 scale folded in), (1, C4) f32 bias
    wfc1_ref, wfc2_ref,  # (C4, Cr) f32, (Cr, C4) f32   SE fc weights
    out_ref,             # (Bblk, H, W, C4) f32
    col_ref,             # VMEM scratch (Bblk, H+2, W, K_PAD) bf16: im2col slab
):
    Bblk, H, W, Cin = x_ref.shape
    P = w1_ref.shape[1]
    C4 = w3_ref.shape[1]
    Kp = col_ref.shape[-1]
    M = Bblk * H * W
    f32 = jnp.float32
    bf16 = jnp.bfloat16

    # --- conv1 (1x1, BN scale pre-folded) + bias + relu: bf16 MXU, f32 accumulation ---
    x2d = x_ref[...].reshape(M, Cin)                      # already bf16
    o1 = jnp.dot(x2d, w1_ref[...], preferred_element_type=f32)
    o1 = jnp.maximum(o1 + b1_ref[...], 0.0).reshape(Bblk, H, W, P)

    # --- build the im2col slab (3x3 conv, stride 1, pad 1) ---
    # The kx-shifted taps are built in registers (sublane slice + concat) and the whole
    # H-row block is written with ONE full-width, lane-dense bf16 store; only the two
    # halo rows are written separately (also full-width). Pad lanes [3P:Kp) are stored
    # as zeros so the zero-padded w2 K rows never multiply garbage.
    zcol = jnp.zeros((Bblk, H, 1, P), f32)
    left = jnp.concatenate([zcol, o1[:, :, : W - 1, :]], axis=2)    # o1 at column x-1
    right = jnp.concatenate([o1[:, :, 1:, :], zcol], axis=2)        # o1 at column x+1
    slab = jnp.concatenate(
        [left.astype(bf16), o1.astype(bf16), right.astype(bf16),
         jnp.zeros((Bblk, H, W, Kp - 3 * P), bf16)], axis=-1)
    col_ref[:, 1:H + 1, :, :] = slab
    halo = jnp.zeros((Bblk, 1, W, Kp), bf16)
    col_ref[:, 0:1, :, :] = halo            # every step: correct under megacore sharding
    col_ref[:, H + 1:H + 2, :, :] = halo

    # --- conv2: three wide-K matmuls indexed only by the cheap row offset ky; the MXU
    #     accumulates the first tap directly (no zeros-init add) ---
    acc = jnp.dot(col_ref[:, 0:H, :, :].reshape(M, Kp), w2_ref[0],
                  preferred_element_type=f32)
    for ky in range(1, 3):
        acc = acc + jnp.dot(col_ref[:, ky:ky + H, :, :].reshape(M, Kp), w2_ref[ky],
                            preferred_element_type=f32)
    o2 = jnp.maximum(acc + b2_ref[...], 0.0)              # (M, P) f32

    # --- conv3 (1x1, BN scale pre-folded) + bias ---
    o3 = jnp.dot(o2.astype(bf16), w3_ref[...], preferred_element_type=f32) + b3_ref[...]

    # --- SE: per-image global avg pool -> fc -> relu -> fc -> sigmoid -> scale (f32) ---
    o3 = o3.reshape(Bblk, H * W, C4)
    y = jnp.mean(o3, axis=1)                                            # (Bblk, C4)
    y = jnp.maximum(jnp.dot(y, wfc1_ref[...], preferred_element_type=f32), 0.0)
    y = jax.nn.sigmoid(jnp.dot(y, wfc2_ref[...], preferred_element_type=f32))
    o3 = o3 * y[:, None, :]
    # TODO(synk): at real 56x56 spatial tiles, stream the SE scale + residual + relu in
    # H-row chunks instead of holding the full (H*W, C4) f32 o3 live.

    # --- identity residual (downsample=None; re-read x from VMEM) + final relu ---
    res = x_ref[...].reshape(Bblk, H * W, C4).astype(f32)
    out = jnp.maximum(o3 + res, 0.0)
    out_ref[...] = out.reshape(Bblk, H, W, C4).astype(out_ref.dtype)


def _prep_params(params):
    """Fold BN scales into the conv weights (f32 fold, then bf16 cast), reshape the 3x3
    weights (9,P,P) -> (3, 3P, P) and zero-pad K to K_PAD lanes."""
    (w1, s1, b1, w2, s2, b2, w3, s3, b3, wfc1, wfc2) = (
        jnp.asarray(p, jnp.float32) for p in params)
    P = w1.shape[1]
    w1f = w1 * s1                 # per-output-channel scale (last axis)
    w2f = w2 * s2                 # (9, P, P) * (1, P): scales output channels
    w3f = w3 * s3
    w2c = w2f.reshape(3, 3, P, P).reshape(3, 3 * P, P)
    w2c = jnp.pad(w2c, ((0, 0), (0, K_PAD - 3 * P), (0, 0)))
    return (
        w1f.astype(jnp.bfloat16), b1,
        w2c.astype(jnp.bfloat16), b2,
        w3f.astype(jnp.bfloat16), b3,
        wfc1, wfc2,
    )


def _full_spec(a):
    n = a.ndim
    return pl.BlockSpec(a.shape, lambda b, n=n: (0,) * n)


def se_bottleneck_nhwc(x_nhwc, params, *, b_blk=2):
    """Core entry point: NHWC in / NHWC out. b_blk images per grid step so the matmul
    M dim (b_blk*H*W) fills the MXU and per-step overhead is amortized; keep the grid
    length >= 2 so the 'parallel' axis can still split across v7x's two TensorCores."""
    kparams = _prep_params(params)
    x = x_nhwc.astype(jnp.bfloat16)            # bf16 I/O: halves the biggest HBM read
    B, H, W, Cin = x.shape
    C4 = kparams[4].shape[1]
    assert Cin == C4, "identity residual path requires inplanes == planes * expansion"
    b_blk = max(1, min(b_blk, B))
    assert B % b_blk == 0, "batch must be divisible by the per-step batch block"

    in_specs = [pl.BlockSpec((b_blk, H, W, Cin), lambda b: (b, 0, 0, 0))]
    in_specs += [_full_spec(a) for a in kparams]

    return pl.pallas_call(
        se_bottleneck_kernel,
        out_shape=jax.ShapeDtypeStruct((B, H, W, C4), jnp.float32),
        grid_spec=pltpu.PrefetchScalarGridSpec(
            num_scalar_prefetch=0,
            grid=(B // b_blk,),
            in_specs=in_specs,
            out_specs=pl.BlockSpec((b_blk, H, W, C4), lambda b: (b, 0, 0, 0)),
            scratch_shapes=[pltpu.VMEM((b_blk, H + 2, W, K_PAD), jnp.bfloat16)],
        ),
        compiler_params=pltpu.CompilerParams(
            dimension_semantics=("parallel",),     # megacore sharding on v7x
            # Footprint here is tiny; raise this on v5e/v6e (128 MiB physical) when
            # enlarging tiles. TODO(synk): at real 56x56 spatial sizes, tile H into row
            # blocks with a 1-row halo (instead of batching) to fit v7x's 64 MiB VMEM.
            vmem_limit_bytes=32 * 1024 * 1024,
        ),
    )(x, *kparams)


def se_bottleneck(x_nchw, params, *, b_blk=2):
    """PyTorch-parity entry point: NCHW in / NCHW out."""
    x = jnp.transpose(x_nchw, (0, 2, 3, 1))
    out = se_bottleneck_nhwc(x, params, b_blk=b_blk)
    return jnp.transpose(out, (0, 3, 1, 2))


def se_bottleneck_ref(x_nchw, params):
    """Pure-JAX reference (same math: BN scales folded into bf16 weights, bf16 matmul
    operands, f32 accumulation, bf16-rounded input)."""
    (w1, s1, b1, w2, s2, b2, w3, s3, b3, wfc1, wfc2) = (
        jnp.asarray(p, jnp.float32) for p in params)
    bf = jnp.bfloat16
    w1b = (w1 * s1).astype(bf)
    w2b = (w2 * s2).astype(bf)
    w3b = (w3 * s3).astype(bf)
    xb = jnp.transpose(x_nchw, (0, 2, 3, 1)).astype(bf)    # kernel input is bf16
    xf = xb.astype(jnp.float32)
    B, H, W, Cin = xb.shape
    P = w1.shape[1]
    o1 = jnp.einsum('bhwc,cp->bhwp', xb, w1b, preferred_element_type=jnp.float32)
    o1 = jnp.maximum(o1 + b1, 0.0)
    pad = jnp.pad(o1, ((0, 0), (1, 1), (1, 1), (0, 0))).astype(bf)
    acc = jnp.zeros((B, H, W, P), jnp.float32)
    for ky in range(3):
        for kx in range(3):
            acc = acc + jnp.einsum('bhwp,pq->bhwq', pad[:, ky:ky + H, kx:kx + W, :],
                                   w2b[ky * 3 + kx], preferred_element_type=jnp.float32)
    o2 = jnp.maximum(acc + b2, 0.0)
    o3 = jnp.einsum('bhwp,pc->bhwc', o2.astype(bf), w3b,
                    preferred_element_type=jnp.float32) + b3
    y = o3.mean(axis=(1, 2))
    y = jnp.maximum(y @ wfc1, 0.0)
    y = jax.nn.sigmoid(y @ wfc2)
    o3 = o3 * y[:, None, None, :]
    out = jnp.maximum(o3 + xf, 0.0)
    return jnp.transpose(out, (0, 3, 1, 2))


if __name__ == "__main__":
    key = jax.random.PRNGKey(0)
    # Real ResNet bottleneck channel widths (lane-dense Cin = C4 = 256), tiny spatial.
    # B=4 with b_blk=2 images per grid step -> MXU M = 128 and a grid of length 2.
    B, planes, H, W = 4, 64, 8, 8
    inplanes = planes * 4          # identity residual (downsample=None) requires this
    C4 = planes * 4
    reduction = 16
    Cr = max(C4 // reduction, 1)   # SE hidden width = channels // reduction
    eps = 1e-5

    keys = jax.random.split(key, 18)
    x = jax.random.normal(keys[0], (B, inplanes, H, W), jnp.float32)

    def bn_fold(kg, kb, km, kv, c):
        gamma = 1.0 + 0.1 * jax.random.normal(kg, (c,), jnp.float32)
        beta = 0.1 * jax.random.normal(kb, (c,), jnp.float32)
        mean = 0.1 * jax.random.normal(km, (c,), jnp.float32)
        var = 0.5 + jax.random.uniform(kv, (c,), jnp.float32)
        scale = gamma / jnp.sqrt(var + eps)
        bias = beta - mean * scale
        return scale[None, :], bias[None, :]

    w1 = 0.1 * jax.random.normal(keys[1], (inplanes, planes), jnp.float32)
    s1, b1 = bn_fold(keys[2], keys[3], keys[4], keys[5], planes)
    w2 = 0.1 * jax.random.normal(keys[6], (9, planes, planes), jnp.float32)
    s2, b2 = bn_fold(keys[7], keys[8], keys[9], keys[10], planes)
    w3 = 0.1 * jax.random.normal(keys[11], (planes, C4), jnp.float32)
    s3, b3 = bn_fold(keys[12], keys[13], keys[14], keys[15], C4)
    wfc1 = 0.1 * jax.random.normal(keys[16], (C4, Cr), jnp.float32)
    wfc2 = 0.1 * jax.random.normal(keys[17], (Cr, C4), jnp.float32)

    params = (w1, s1, b1, w2, s2, b2, w3, s3, b3, wfc1, wfc2)

    out = jax.block_until_ready(se_bottleneck(x, params, b_blk=2))
    ref = jax.block_until_ready(se_bottleneck_ref(x, params))
    assert out.shape == (B, C4, H, W), out.shape
    err = float(jnp.max(jnp.abs(out - ref)))
    assert jnp.allclose(out, ref, atol=1e-2, rtol=1e-2), err
    print("KERNEL_OK")
</pallas_src>

<mosaic_0001>
module attributes {stable_mosaic.version = 11 : i64} {
  func.func @se_bottleneck_kernel(%arg0: i32, %arg1: memref<2x8x8x256xbf16, #tpu.memory_space<vmem>>, %arg2: memref<256x64xbf16, #tpu.memory_space<vmem>>, %arg3: memref<1x64xf32, #tpu.memory_space<vmem>>, %arg4: memref<3x256x64xbf16, #tpu.memory_space<vmem>>, %arg5: memref<1x64xf32, #tpu.memory_space<vmem>>, %arg6: memref<64x256xbf16, #tpu.memory_space<vmem>>, %arg7: memref<1x256xf32, #tpu.memory_space<vmem>>, %arg8: memref<256x16xf32, #tpu.memory_space<vmem>>, %arg9: memref<16x256xf32, #tpu.memory_space<vmem>>, %arg10: memref<2x8x8x256xf32, #tpu.memory_space<vmem>>, %arg11: memref<2x10x8x256xbf16, #tpu.memory_space<vmem>>) attributes {dimension_semantics = [#tpu.dimension_semantics<parallel>], iteration_bounds = array<i64: 2>, scalar_prefetch = 0 : i64, scratch_operands = 1 : i64, tpu.core_type = #tpu.core_type<tc>, window_params = [{transform_indices = @transform_0, window_bounds = array<i64: 2, 8, 8, 256>}, {pipeline_mode = #tpu.pipeline_mode<synchronous>, transform_indices = @transform_1, window_bounds = array<i64: 256, 64>}, {pipeline_mode = #tpu.pipeline_mode<synchronous>, transform_indices = @transform_2, window_bounds = array<i64: 1, 64>}, {pipeline_mode = #tpu.pipeline_mode<synchronous>, transform_indices = @transform_3, window_bounds = array<i64: 3, 256, 64>}, {pipeline_mode = #tpu.pipeline_mode<synchronous>, transform_indices = @transform_4, window_bounds = array<i64: 1, 64>}, {pipeline_mode = #tpu.pipeline_mode<synchronous>, transform_indices = @transform_5, window_bounds = array<i64: 64, 256>}, {pipeline_mode = #tpu.pipeline_mode<synchronous>, transform_indices = @transform_6, window_bounds = array<i64: 1, 256>}, {pipeline_mode = #tpu.pipeline_mode<synchronous>, transform_indices = @transform_7, window_bounds = array<i64: 256, 16>}, {pipeline_mode = #tpu.pipeline_mode<synchronous>, transform_indices = @transform_8, window_bounds = array<i64: 16, 256>}, {transform_indices = @transform_9, window_bounds = array<i64: 2, 8, 8, 256>}]} {
    %c0 = arith.constant 0 : index
    %c0_0 = arith.constant 0 : index
    %c0_1 = arith.constant 0 : index
    %c0_2 = arith.constant 0 : index
    %0 = vector.load %arg1[%c0, %c0_0, %c0_1, %c0_2] : memref<2x8x8x256xbf16, #tpu.memory_space<vmem>>, vector<2x8x8x256xbf16>
    %1 = vector.shape_cast %0 : vector<2x8x8x256xbf16> to vector<128x256xbf16>
    %c0_3 = arith.constant 0 : index
    %c0_4 = arith.constant 0 : index
    %2 = vector.load %arg2[%c0_3, %c0_4] : memref<256x64xbf16, #tpu.memory_space<vmem>>, vector<256x64xbf16>
    %cst = arith.constant dense<0.000000e+00> : vector<128x64xf32>
    %3 = tpu.matmul %1, %2, %cst {dimension_numbers = #tpu.dot_dimension_numbers<[1], [0], [0], [1], [0, 0, 1, 1], [], []>} : vector<128x256xbf16>, vector<256x64xbf16>, vector<128x64xf32> -> vector<128x64xf32>
    %c0_5 = arith.constant 0 : index
    %c0_6 = arith.constant 0 : index
    %4 = vector.load %arg3[%c0_5, %c0_6] : memref<1x64xf32, #tpu.memory_space<vmem>>, vector<1x64xf32>
    %5 = vector.broadcast %4 : vector<1x64xf32> to vector<128x64xf32>
    %6 = arith.addf %3, %5 : vector<128x64xf32>
    %cst_7 = arith.constant 0.000000e+00 : f32
    %7 = vector.broadcast %cst_7 : f32 to vector<128x64xf32>
    %8 = arith.maximumf %6, %7 : vector<128x64xf32>
    %9 = vector.shape_cast %8 : vector<128x64xf32> to vector<2x8x8x64xf32>
    %cst_8 = arith.constant 0.000000e+00 : f32
    %10 = vector.broadcast %cst_8 : f32 to vector<2x8x1x64xf32>
    %11 = vector.extract_strided_slice %9 {offsets = [0, 0, 0, 0], sizes = [2, 8, 7, 64], strides = [1, 1, 1, 1]} : vector<2x8x8x64xf32> to vector<2x8x7x64xf32>
    %12 = tpu.concatenate %10, %11 in 2 : vector<2x8x1x64xf32>, vector<2x8x7x64xf32> -> vector<2x8x8x64xf32>
    %13 = vector.extract_strided_slice %9 {offsets = [0, 0, 1, 0], sizes = [2, 8, 7, 64], strides = [1, 1, 1, 1]} : vector<2x8x8x64xf32> to vector<2x8x7x64xf32>
    %14 = tpu.concatenate %13, %10 in 2 : vector<2x8x7x64xf32>, vector<2x8x1x64xf32> -> vector<2x8x8x64xf32>
    %15 = arith.truncf %12 : vector<2x8x8x64xf32> to vector<2x8x8x64xbf16>
    %16 = arith.truncf %9 : vector<2x8x8x64xf32> to vector<2x8x8x64xbf16>
    %17 = arith.truncf %14 : vector<2x8x8x64xf32> to vector<2x8x8x64xbf16>
    %cst_9 = arith.constant 0.000000e+00 : bf16
    %18 = vector.broadcast %cst_9 : bf16 to vector<2x8x8x64xbf16>
    %19 = tpu.concatenate %15, %16, %17, %18 in 3 : vector<2x8x8x64xbf16>, vector<2x8x8x64xbf16>, vector<2x8x8x64xbf16>, vector<2x8x8x64xbf16> -> vector<2x8x8x256xbf16>
    %c0_10 = arith.constant 0 : index
    %c1 = arith.constant 1 : index
    %c0_11 = arith.constant 0 : index
    %c0_12 = arith.constant 0 : index
    %20 = vector.load %arg11[%c0_10, %c1, %c0_11, %c0_12] : memref<2x10x8x256xbf16, #tpu.memory_space<vmem>>, vector<2x8x8x256xbf16>
    tpu.vector_store %arg11[%c0_10, %c1, %c0_11, %c0_12], %19 {strides = array<i32>} : memref<2x10x8x256xbf16, #tpu.memory_space<vmem>>, vector<2x8x8x256xbf16>,
    %cst_13 = arith.constant 0.000000e+00 : bf16
    %21 = vector.broadcast %cst_13 : bf16 to vector<2x1x8x256xbf16>
    %c0_14 = arith.constant 0 : index
    %c0_15 = arith.constant 0 : index
    %c0_16 = arith.constant 0 : index
    %c0_17 = arith.constant 0 : index
    %22 = vector.load %arg11[%c0_14, %c0_15, %c0_16, %c0_17] : memref<2x10x8x256xbf16, #tpu.memory_space<vmem>>, vector<2x1x8x256xbf16>
    tpu.vector_store %arg11[%c0_14, %c0_15, %c0_16, %c0_17], %21 {strides = array<i32>} : memref<2x10x8x256xbf16, #tpu.memory_space<vmem>>, vector<2x1x8x256xbf16>,
    %c0_18 = arith.constant 0 : index
    %c9 = arith.constant 9 : index
    %c0_19 = arith.constant 0 : index
    %c0_20 = arith.constant 0 : index
    %23 = vector.load %arg11[%c0_18, %c9, %c0_19, %c0_20] : memref<2x10x8x256xbf16, #tpu.memory_space<vmem>>, vector<2x1x8x256xbf16>
    tpu.vector_store %arg11[%c0_18, %c9, %c0_19, %c0_20], %21 {strides = array<i32>} : memref<2x10x8x256xbf16, #tpu.memory_space<vmem>>, vector<2x1x8x256xbf16>,
    %c0_21 = arith.constant 0 : index
    %c0_22 = arith.constant 0 : index
    %c0_23 = arith.constant 0 : index
    %c0_24 = arith.constant 0 : index
    %24 = vector.load %arg11[%c0_21, %c0_22, %c0_23, %c0_24] : memref<2x10x8x256xbf16, #tpu.memory_space<vmem>>, vector<2x8x8x256xbf16>
    %25 = vector.shape_cast %24 : vector<2x8x8x256xbf16> to vector<128x256xbf16>
    %c0_25 = arith.constant 0 : index
    %c0_26 = arith.constant 0 : index
    %c0_27 = arith.constant 0 : index
    %26 = vector.load %arg4[%c0_25, %c0_26, %c0_27] : memref<3x256x64xbf16, #tpu.memory_space<vmem>>, vector<1x256x64xbf16>
    %27 = vector.shape_cast %26 : vector<1x256x64xbf16> to vector<256x64xbf16>
    %cst_28 = arith.constant dense<0.000000e+00> : vector<128x64xf32>
    %28 = tpu.matmul %25, %27, %cst_28 {dimension_numbers = #tpu.dot_dimension_numbers<[1], [0], [0], [1], [0, 0, 1, 1], [], []>} : vector<128x256xbf16>, vector<256x64xbf16>, vector<128x64xf32> -> vector<128x64xf32>
    %c0_29 = arith.constant 0 : index
    %c1_30 = arith.constant 1 : index
    %c0_31 = arith.constant 0 : index
    %c0_32 = arith.constant 0 : index
    %29 = vector.load %arg11[%c0_29, %c1_30, %c0_31, %c0_32] : memref<2x10x8x256xbf16, #tpu.memory_space<vmem>>, vector<2x8x8x256xbf16>
    %30 = vector.shape_cast %29 : vector<2x8x8x256xbf16> to vector<128x256xbf16>
    %c1_33 = arith.constant 1 : index
    %c0_34 = arith.constant 0 : index
    %c0_35 = arith.constant 0 : index
    %31 = vector.load %arg4[%c1_33, %c0_34, %c0_35] : memref<3x256x64xbf16, #tpu.memory_space<vmem>>, vector<1x256x64xbf16>
    %32 = vector.shape_cast %31 : vector<1x256x64xbf16> to vector<256x64xbf16>
    %cst_36 = arith.constant dense<0.000000e+00> : vector<128x64xf32>
    %33 = tpu.matmul %30, %32, %cst_36 {dimension_numbers = #tpu.dot_dimension_numbers<[1], [0], [0], [1], [0, 0, 1, 1], [], []>} : vector<128x256xbf16>, vector<256x64xbf16>, vector<128x64xf32> -> vector<128x64xf32>
    %34 = arith.addf %28, %33 : vector<128x64xf32>
    %c0_37 = arith.constant 0 : index
    %c2 = arith.constant 2 : index
    %c0_38 = arith.constant 0 : index
    %c0_39 = arith.constant 0 : index
    %35 = vector.load %arg11[%c0_37, %c2, %c0_38, %c0_39] : memref<2x10x8x256xbf16, #tpu.memory_space<vmem>>, vector<2x8x8x256xbf16>
    %36 = vector.shape_cast %35 : vector<2x8x8x256xbf16> to vector<128x256xbf16>
    %c2_40 = arith.constant 2 : index
    %c0_41 = arith.constant 0 : index
    %c0_42 = arith.constant 0 : index
    %37 = vector.load %arg4[%c2_40, %c0_41, %c0_42] : memref<3x256x64xbf16, #tpu.memory_space<vmem>>, vector<1x256x64xbf16>
    %38 = vector.shape_cast %37 : vector<1x256x64xbf16> to vector<256x64xbf16>
    %cst_43 = arith.constant dense<0.000000e+00> : vector<128x64xf32>
    %39 = tpu.matmul %36, %38, %cst_43 {dimension_numbers = #tpu.dot_dimension_numbers<[1], [0], [0], [1], [0, 0, 1, 1], [], []>} : vector<128x256xbf16>, vector<256x64xbf16>, vector<128x64xf32> -> vector<128x64xf32>
    %40 = arith.addf %34, %39 : vector<128x64xf32>
    %c0_44 = arith.constant 0 : index
    %c0_45 = arith.constant 0 : index
    %41 = vector.load %arg5[%c0_44, %c0_45] : memref<1x64xf32, #tpu.memory_space<vmem>>, vector<1x64xf32>
    %42 = vector.broadcast %41 : vector<1x64xf32> to vector<128x64xf32>
    %43 = arith.addf %40, %42 : vector<128x64xf32>
    %cst_46 = arith.constant 0.000000e+00 : f32
    %44 = vector.broadcast %cst_46 : f32 to vector<128x64xf32>
    %45 = arith.maximumf %43, %44 : vector<128x64xf32>
    %46 = arith.truncf %45 : vector<128x64xf32> to vector<128x64xbf16>
    %c0_47 = arith.constant 0 : index
    %c0_48 = arith.constant 0 : index
    %47 = vector.load %arg6[%c0_47, %c0_48] : memref<64x256xbf16, #tpu.memory_space<vmem>>, vector<64x256xbf16>
    %cst_49 = arith.constant dense<0.000000e+00> : vector<128x256xf32>
    %48 = tpu.matmul %46, %47, %cst_49 {dimension_numbers = #tpu.dot_dimension_numbers<[1], [0], [0], [1], [0, 0, 1, 1], [], []>} : vector<128x64xbf16>, vector<64x256xbf16>, vector<128x256xf32> -> vector<128x256xf32>
    %c0_50 = arith.constant 0 : index
    %c0_51 = arith.constant 0 : index
    %49 = vector.load %arg7[%c0_50, %c0_51] : memref<1x256xf32, #tpu.memory_space<vmem>>, vector<1x256xf32>
    %50 = vector.broadcast %49 : vector<1x256xf32> to vector<128x256xf32>
    %51 = arith.addf %48, %50 : vector<128x256xf32>
    %52 = vector.shape_cast %51 : vector<128x256xf32> to vector<2x64x256xf32>
    %cst_52 = arith.constant dense<0.000000e+00> : vector<2x256xf32>
    %53 = vector.multi_reduction <add>, %52, %cst_52 [1] : vector<2x64x256xf32> to vector<2x256xf32>
    %cst_53 = arith.constant 6.400000e+01 : f32
    %54 = vector.broadcast %cst_53 : f32 to vector<2x256xf32>
    %55 = arith.divf %53, %54 : vector<2x256xf32>
    %c0_54 = arith.constant 0 : index
    %c0_55 = arith.constant 0 : index
    %56 = vector.load %arg8[%c0_54, %c0_55] : memref<256x16xf32, #tpu.memory_space<vmem>>, vector<256x16xf32>
    %cst_56 = arith.constant dense<0.000000e+00> : vector<2x16xf32>
    %57 = tpu.matmul %55, %56, %cst_56 {dimension_numbers = #tpu.dot_dimension_numbers<[1], [0], [0], [1], [0, 0, 1, 1], [], []>} : vector<2x256xf32>, vector<256x16xf32>, vector<2x16xf32> -> vector<2x16xf32>
    %cst_57 = arith.constant 0.000000e+00 : f32
    %58 = vector.broadcast %cst_57 : f32 to vector<2x16xf32>
    %59 = arith.maximumf %57, %58 : vector<2x16xf32>
    %c0_58 = arith.constant 0 : index
    %c0_59 = arith.constant 0 : index
    %60 = vector.load %arg9[%c0_58, %c0_59] : memref<16x256xf32, #tpu.memory_space<vmem>>, vector<16x256xf32>
    %cst_60 = arith.constant dense<0.000000e+00> : vector<2x256xf32>
    %61 = tpu.matmul %59, %60, %cst_60 {dimension_numbers = #tpu.dot_dimension_numbers<[1], [0], [0], [1], [0, 0, 1, 1], [], []>} : vector<2x16xf32>, vector<16x256xf32>, vector<2x256xf32> -> vector<2x256xf32>
    %62 = arith.negf %61 : vector<2x256xf32>
    %63 = math.exp %62 : vector<2x256xf32>
    %cst_61 = arith.constant 1.000000e+00 : f32
    %64 = vector.broadcast %cst_61 : f32 to vector<2x256xf32>
    %65 = arith.addf %64, %63 : vector<2x256xf32>
    %66 = arith.divf %64, %65 : vector<2x256xf32>
    %67 = vector.shape_cast %66 : vector<2x256xf32> to vector<2x1x256xf32>
    %68 = vector.broadcast %67 : vector<2x1x256xf32> to vector<2x64x256xf32>
    %69 = arith.mulf %52, %68 : vector<2x64x256xf32>
    %c0_62 = arith.constant 0 : index
    %c0_63 = arith.constant 0 : index
    %c0_64 = arith.constant 0 : index
    %c0_65 = arith.constant 0 : index
    %70 = vector.load %arg1[%c0_62, %c0_63, %c0_64, %c0_65] : memref<2x8x8x256xbf16, #tpu.memory_space<vmem>>, vector<2x8x8x256xbf16>
    %71 = vector.shape_cast %70 : vector<2x8x8x256xbf16> to vector<2x64x256xbf16>
    %72 = arith.extf %71 : vector<2x64x256xbf16> to vector<2x64x256xf32>
    %73 = arith.addf %69, %72 : vector<2x64x256xf32>
    %cst_66 = arith.constant 0.000000e+00 : f32
    %74 = vector.broadcast %cst_66 : f32 to vector<2x64x256xf32>
    %75 = arith.maximumf %73, %74 : vector<2x64x256xf32>
    %76 = vector.shape_cast %75 : vector<2x64x256xf32> to vector<2x8x8x256xf32>
    %c0_67 = arith.constant 0 : index
    %c0_68 = arith.constant 0 : index
    %c0_69 = arith.constant 0 : index
    %c0_70 = arith.constant 0 : index
    %77 = vector.load %arg10[%c0_67, %c0_68, %c0_69, %c0_70] : memref<2x8x8x256xf32, #tpu.memory_space<vmem>>, vector<2x8x8x256xf32>
    tpu.vector_store %arg10[%c0_67, %c0_68, %c0_69, %c0_70], %76 {strides = array<i32>} : memref<2x8x8x256xf32, #tpu.memory_space<vmem>>, vector<2x8x8x256xf32>,
    return
  }
  func.func @transform_0(%arg0: i32) -> (i32, i32, i32, i32) {
    %c0_i32 = arith.constant 0 : i32
    %c0_i32_0 = arith.constant 0 : i32
    %c0_i32_1 = arith.constant 0 : i32
    %c0_i32_2 = arith.constant 0 : i32
    return %arg0, %c0_i32, %c0_i32_0, %c0_i32_1 : i32, i32, i32, i32
  }
  func.func @transform_1(%arg0: i32) -> (i32, i32) {
    %c0_i32 = arith.constant 0 : i32
    %c0_i32_0 = arith.constant 0 : i32
    %c0_i32_1 = arith.constant 0 : i32
    return %c0_i32, %c0_i32_0 : i32, i32
  }
  func.func @transform_2(%arg0: i32) -> (i32, i32) {
    %c0_i32 = arith.constant 0 : i32
    %c0_i32_0 = arith.constant 0 : i32
    %c0_i32_1 = arith.constant 0 : i32
    return %c0_i32, %c0_i32_0 : i32, i32
  }
  func.func @transform_3(%arg0: i32) -> (i32, i32, i32) {
    %c0_i32 = arith.constant 0 : i32
    %c0_i32_0 = arith.constant 0 : i32
    %c0_i32_1 = arith.constant 0 : i32
    %c0_i32_2 = arith.constant 0 : i32
    return %c0_i32, %c0_i32_0, %c0_i32_1 : i32, i32, i32
  }
  func.func @transform_4(%arg0: i32) -> (i32, i32) {
    %c0_i32 = arith.constant 0 : i32
    %c0_i32_0 = arith.constant 0 : i32
    %c0_i32_1 = arith.constant 0 : i32
    return %c0_i32, %c0_i32_0 : i32, i32
  }
  func.func @transform_5(%arg0: i32) -> (i32, i32) {
    %c0_i32 = arith.constant 0 : i32
    %c0_i32_0 = arith.constant 0 : i32
    %c0_i32_1 = arith.constant 0 : i32
    return %c0_i32, %c0_i32_0 : i32, i32
  }
  func.func @transform_6(%arg0: i32) -> (i32, i32) {
    %c0_i32 = arith.constant 0 : i32
    %c0_i32_0 = arith.constant 0 : i32
    %c0_i32_1 = arith.constant 0 : i32
    return %c0_i32, %c0_i32_0 : i32, i32
  }
  func.func @transform_7(%arg0: i32) -> (i32, i32) {
    %c0_i32 = arith.constant 0 : i32
    %c0_i32_0 = arith.constant 0 : i32
    %c0_i32_1 = arith.constant 0 : i32
    return %c0_i32, %c0_i32_0 : i32, i32
  }
  func.func @transform_8(%arg0: i32) -> (i32, i32) {
    %c0_i32 = arith.constant 0 : i32
    %c0_i32_0 = arith.constant 0 : i32
    %c0_i32_1 = arith.constant 0 : i32
    return %c0_i32, %c0_i32_0 : i32, i32
  }
  func.func @transform_9(%arg0: i32) -> (i32, i32, i32, i32) {
    %c0_i32 = arith.constant 0 : i32
    %c0_i32_0 = arith.constant 0 : i32
    %c0_i32_1 = arith.constant 0 : i32
    %c0_i32_2 = arith.constant 0 : i32
    return %arg0, %c0_i32, %c0_i32_0, %c0_i32_1 : i32, i32, i32, i32
  }
}

</mosaic_0001>

<llo_original>
// kernel: tpu_custom_call.1
$region0: #{tpu_custom_call.1}
  #allocation0 [shape = 'u32[]', space=smem, size = 0x4, offset = 0x4, fixed_abs, tag = 'smem constant byte address 0x4 - core index']
  #allocation1 [shape = 'u32[144,128]{1,0:T(1,128)}', space=vmem, size = 0x12000, scoped, tag = 'internal scratch']
  #allocation2 [shape = 'bf16[2,10,8,256]{3,2,1,0:T(8,128)(2,1)}', space=vmem, size = 0x14000, scoped, tag = 'scratch operand']
  %s0 = inlined_call_operand.vmem [shape: bf16[4,8,8,256], index: 0, kind: input, shape index: {}]
  %s1 = inlined_call_operand.vmem [shape: bf16[256,64], index: 1, kind: input, shape index: {}]
  %s2 = inlined_call_operand.vmem [shape: f32[1,64], index: 2, kind: input, shape index: {}]
  %s3 = inlined_call_operand.vmem [shape: bf16[3,256,64], index: 3, kind: input, shape index: {}]
  %s4 = inlined_call_operand.vmem [shape: f32[1,64], index: 4, kind: input, shape index: {}]
  %s5 = inlined_call_operand.vmem [shape: bf16[64,256], index: 5, kind: input, shape index: {}]
  %s6 = inlined_call_operand.vmem [shape: f32[1,256], index: 6, kind: input, shape index: {}]
  %s7 = inlined_call_operand.vmem [shape: f32[256,16], index: 7, kind: input, shape index: {}]
  %s8 = inlined_call_operand.vmem [shape: f32[16,256], index: 8, kind: input, shape index: {}]
  %s9 = inlined_call_operand.hbm [shape: f32[4,8,8,256], index: 9, kind: output, shape index: {}]
  %s10 = sld [smem:[#allocation0]]
  $region69: #{tpu_custom_call.1} parent=0
    _
  %s12 = ssub.s32 1, %s10
  %s13 = scalar_select 0, %s12, %s10
  $region1: #{tpu_custom_call.1} parent=0
    #allocation3 [shape = 'u8[262144]{0}', space=vmem, size = 0x40000, scoped, tag = 'output window, operand 0']
    #allocation4 [shape = 's32[2]{0}', space=sflag, size = 0x8, scoped, tag = 'scoped memory for tpu_custom_call.1']
    %14 = vsyncpa [#allocation4], 0
    %s15 = scalar_lea.sflag [#allocation4], 1
    %16 = vsyncpa %s15, 0
    loop: start=0, step=1, limit=4
    $region2: #{tpu_custom_call.1} parent=1 // loop_pre_header
      _
    $region3: #{tpu_custom_call.1} parent=1 // loop_header
      %s18 = sphi 0, %s22
      %p19 = scmp.ge.s32.totalorder %s18, 4
      %s28 = sphi 0, %s30
      %s31 = sphi 0, %s28
      %s32 = sphi 0, %s31
      %s48 = sphi 0, %s32
      %s52 = sphi 0, %s52
      %s54 = sphi 0, %s52
      %s55 = sphi 0, %s54
      %s69 = sphi 0, %s55
      %s73 = sphi 0, %s73
      %s75 = sphi 0, %s73
      %s76 = sphi 0, %s75
      %s90 = sphi 0, %s76
      %s94 = sphi 0, %s94
      %s96 = sphi 0, %s94
      %s97 = sphi 0, %s96
      %s111 = sphi 0, %s97
      %s115 = sphi 0, %s115
      %s117 = sphi 0, %s115
      %s118 = sphi 0, %s117
      %s132 = sphi 0, %s118
      %s136 = sphi 0, %s136
      %s138 = sphi 0, %s136
      %s139 = sphi 0, %s138
      %s153 = sphi 0, %s139
      %s157 = sphi 0, %s157
      %s159 = sphi 0, %s157
      %s160 = sphi 0, %s159
      %s174 = sphi 0, %s160
      %s178 = sphi 0, %s178
      %s180 = sphi 0, %s178
      %s181 = sphi 0, %s180
      %s195 = sphi 0, %s181
      %s199 = sphi 0, %s199
      %s201 = sphi 0, %s199
      %s202 = sphi 0, %s201
      %s216 = sphi 0, %s202
      %s222 = sphi 0, %s224
      %s225 = sphi 0, %s222
      %s226 = sphi 0, %s225
      %s242 = sphi 0, %s226
    $region4: #{tpu_custom_call.1} parent=1 // loop_header_branch
      %21 = sbr.rel (%p19) target = $region8
    $region5: #{tpu_custom_call.1} parent=1 // loop_body
      %s23 = ssub.s32 %s18, 1
      %s24 = ssub.s32 %s18, 2
      %s25 = sadd.s32 %s18, 1
      %s26 = ssub.s32 %s18, %s25
      %p27 = scmp.eq.s32.totalorder %s26, 0
      %s29 = sadd.s32 %s28, 1
      %s30 = scalar_select %p27, %s28, %s29
      %p33 = pneg %p27
      %p34 = scmp.eq.s32.totalorder %s18, 1
      %p35 = por %p33, %p34
      %p36 = scmp.ne.s32.totalorder %s28, %s31
      %p37 = scmp.eq.s32.totalorder %s18, 0
      %p38 = por %p36, %p37
      %p39 = scmp.ne.s32.totalorder %s28, %s31
      %p40 = scmp.eq.s32.totalorder %s23, 1
      %p41 = por %p39, %p40
      %p42 = scmp.ne.s32.totalorder %s31, %s32
      %p43 = scmp.eq.s32.totalorder %s23, 0
      %p44 = por %p42, %p43
      %p45 = scmp.ne.s32.totalorder %s31, %s32
      %p46 = scmp.eq.s32.totalorder %s24, 1
      %p47 = por %p45, %p46
      %p49 = scmp.ne.s32.totalorder %s32, %s48
      %p50 = scmp.eq.s32.totalorder %s24, 0
      %p51 = por %p49, %p50
      %s53 = sadd.s32 %s52, 1
      %p56 = scmp.eq.s32.totalorder %s18, 1
      %p57 = scmp.ne.s32.totalorder %s52, %s54
      %p58 = scmp.eq.s32.totalorder %s18, 0
      %p59 = por %p57, %p58
      %p60 = scmp.ne.s32.totalorder %s52, %s54
      %p61 = scmp.eq.s32.totalorder %s23, 1
      %p62 = por %p60, %p61
      %p63 = scmp.ne.s32.totalorder %s54, %s55
      %p64 = scmp.eq.s32.totalorder %s23, 0
      %p65 = por %p63, %p64
      %p66 = scmp.ne.s32.totalorder %s54, %s55
      %p67 = scmp.eq.s32.totalorder %s24, 1
      %p68 = por %p66, %p67
      %p70 = scmp.ne.s32.totalorder %s55, %s69
      %p71 = scmp.eq.s32.totalorder %s24, 0
      %p72 = por %p70, %p71
      %s74 = sadd.s32 %s73, 1
      %p77 = scmp.eq.s32.totalorder %s18, 1
      %p78 = scmp.ne.s32.totalorder %s73, %s75
      %p79 = scmp.eq.s32.totalorder %s18, 0
      %p80 = por %p78, %p79
      %p81 = scmp.ne.s32.totalorder %s73, %s75
      %p82 = scmp.eq.s32.totalorder %s23, 1
      %p83 = por %p81, %p82
      %p84 = scmp.ne.s32.totalorder %s75, %s76
      %p85 = scmp.eq.s32.totalorder %s23, 0
      %p86 = por %p84, %p85
      %p87 = scmp.ne.s32.totalorder %s75, %s76
      %p88 = scmp.eq.s32.totalorder %s24, 1
      %p89 = por %p87, %p88
      %p91 = scmp.ne.s32.totalorder %s76, %s90
      %p92 = scmp.eq.s32.totalorder %s24, 0
      %p93 = por %p91, %p92
      %s95 = sadd.s32 %s94, 1
      %p98 = scmp.eq.s32.totalorder %s18, 1
      %p99 = scmp.ne.s32.totalorder %s94, %s96
      %p100 = scmp.eq.s32.totalorder %s18, 0
      %p101 = por %p99, %p100
      %p102 = scmp.ne.s32.totalorder %s94, %s96
      %p103 = scmp.eq.s32.totalorder %s23, 1
      %p104 = por %p102, %p103
      %p105 = scmp.ne.s32.totalorder %s96, %s97
      %p106 = scmp.eq.s32.totalorder %s23, 0
      %p107 = por %p105, %p106
      %p108 = scmp.ne.s32.totalorder %s96, %s97
      %p109 = scmp.eq.s32.totalorder %s24, 1
      %p110 = por %p108, %p109
      %p112 = scmp.ne.s32.totalorder %s97, %s111
      %p113 = scmp.eq.s32.totalorder %s24, 0
      %p114 = por %p112, %p113
      %s116 = sadd.s32 %s115, 1
      %p119 = scmp.eq.s32.totalorder %s18, 1
      %p120 = scmp.ne.s32.totalorder %s115, %s117
      %p121 = scmp.eq.s32.totalorder %s18, 0
      %p122 = por %p120, %p121
      %p123 = scmp.ne.s32.totalorder %s115, %s117
      %p124 = scmp.eq.s32.totalorder %s23, 1
      %p125 = por %p123, %p124
      %p126 = scmp.ne.s32.totalorder %s117, %s118
      %p127 = scmp.eq.s32.totalorder %s23, 0
      %p128 = por %p126, %p127
      %p129 = scmp.ne.s32.totalorder %s117, %s118
      %p130 = scmp.eq.s32.totalorder %s24, 1
      %p131 = por %p129, %p130
      %p133 = scmp.ne.s32.totalorder %s118, %s132
      %p134 = scmp.eq.s32.totalorder %s24, 0
      %p135 = por %p133, %p134
      %s137 = sadd.s32 %s136, 1
      %p140 = scmp.eq.s32.totalorder %s18, 1
      %p141 = scmp.ne.s32.totalorder %s136, %s138
      %p142 = scmp.eq.s32.totalorder %s18, 0
      %p143 = por %p141, %p142
      %p144 = scmp.ne.s32.totalorder %s136, %s138
      %p145 = scmp.eq.s32.totalorder %s23, 1
      %p146 = por %p144, %p145
      %p147 = scmp.ne.s32.totalorder %s138, %s139
      %p148 = scmp.eq.s32.totalorder %s23, 0
      %p149 = por %p147, %p148
      %p150 = scmp.ne.s32.totalorder %s138, %s139
      %p151 = scmp.eq.s32.totalorder %s24, 1
      %p152 = por %p150, %p151
      %p154 = scmp.ne.s32.totalorder %s139, %s153
      %p155 = scmp.eq.s32.totalorder %s24, 0
      %p156 = por %p154, %p155
      %s158 = sadd.s32 %s157, 1
      %p161 = scmp.eq.s32.totalorder %s18, 1
      %p162 = scmp.ne.s32.totalorder %s157, %s159
      %p163 = scmp.eq.s32.totalorder %s18, 0
      %p164 = por %p162, %p163
      %p165 = scmp.ne.s32.totalorder %s157, %s159
      %p166 = scmp.eq.s32.totalorder %s23, 1
      %p167 = por %p165, %p166
      %p168 = scmp.ne.s32.totalorder %s159, %s160
      %p169 = scmp.eq.s32.totalorder %s23, 0
      %p170 = por %p168, %p169
      %p171 = scmp.ne.s32.totalorder %s159, %s160
      %p172 = scmp.eq.s32.totalorder %s24, 1
      %p173 = por %p171, %p172
      %p175 = scmp.ne.s32.totalorder %s160, %s174
      %p176 = scmp.eq.s32.totalorder %s24, 0
      %p177 = por %p175, %p176
      %s179 = sadd.s32 %s178, 1
      %p182 = scmp.eq.s32.totalorder %s18, 1
      %p183 = scmp.ne.s32.totalorder %s178, %s180
      %p184 = scmp.eq.s32.totalorder %s18, 0
      %p185 = por %p183, %p184
      %p186 = scmp.ne.s32.totalorder %s178, %s180
      %p187 = scmp.eq.s32.totalorder %s23, 1
      %p188 = por %p186, %p187
      %p189 = scmp.ne.s32.totalorder %s180, %s181
      %p190 = scmp.eq.s32.totalorder %s23, 0
      %p191 = por %p189, %p190
      %p192 = scmp.ne.s32.totalorder %s180, %s181
      %p193 = scmp.eq.s32.totalorder %s24, 1
      %p194 = por %p192, %p193
      %p196 = scmp.ne.s32.totalorder %s181, %s195
      %p197 = scmp.eq.s32.totalorder %s24, 0
      %p198 = por %p196, %p197
      %s200 = sadd.s32 %s199, 1
      %p203 = scmp.eq.s32.totalorder %s18, 1
      %p204 = scmp.ne.s32.totalorder %s199, %s201
      %p205 = scmp.eq.s32.totalorder %s18, 0
      %p206 = por %p204, %p205
      %p207 = scmp.ne.s32.totalorder %s199, %s201
      %p208 = scmp.eq.s32.totalorder %s23, 1
      %p209 = por %p207, %p208
      %p210 = scmp.ne.s32.totalorder %s201, %s202
      %p211 = scmp.eq.s32.totalorder %s23, 0
      %p212 = por %p210, %p211
      %p213 = scmp.ne.s32.totalorder %s201, %s202
      %p214 = scmp.eq.s32.totalorder %s24, 1
      %p215 = por %p213, %p214
      %p217 = scmp.ne.s32.totalorder %s202, %s216
      %p218 = scmp.eq.s32.totalorder %s24, 0
      %p219 = por %p217, %p218
      %s220 = ssub.s32 %s18, %s25
      %p221 = scmp.eq.s32.totalorder %s220, 0
      %s223 = sadd.s32 %s222, 1
      %s224 = scalar_select %p221, %s222, %s223
      %p227 = pneg %p221
      %p228 = scmp.eq.s32.totalorder %s18, 1
      %p229 = por %p227, %p228
      %p230 = scmp.ne.s32.totalorder %s222, %s225
      %p231 = scmp.eq.s32.totalorder %s18, 0
      %p232 = por %p230, %p231
      %p233 = scmp.ne.s32.totalorder %s222, %s225
      %p234 = scmp.eq.s32.totalorder %s23, 1
      %p235 = por %p233, %p234
      %p236 = scmp.ne.s32.totalorder %s225, %s226
      %p237 = scmp.eq.s32.totalorder %s23, 0
      %p238 = por %p236, %p237
      %p239 = scmp.ne.s32.totalorder %s225, %s226
      %p240 = scmp.eq.s32.totalorder %s24, 1
      %p241 = por %p239, %p240
      %p243 = scmp.ne.s32.totalorder %s226, %s242
      %p244 = scmp.eq.s32.totalorder %s24, 0
      %p245 = por %p243, %p244
      %p246 = scmp.le.s32.totalorder 1, %s18
      %p247 = scmp.lt.s32.totalorder %s18, 3
      %p248 = pnand %p246, %p247
      %p249 = pneg %p248
      // Predicated region
      $region9: #{tpu_custom_call.1} parent=5 // pred_check
        _
      $region10: #{tpu_custom_call.1} parent=5 // pred_check_branch
        %251 = sbr.rel (%p248) target = $region12
      $region11: #{tpu_custom_call.1} parent=5 // pred_region
        %s252 = ssub.s32 %s18, 1
        // Predicated region
        $region13: #{tpu_custom_call.1} parent=11 // pred_check
          %p253 = pneg %p65
        $region14: #{tpu_custom_call.1} parent=11 // pred_check_branch
          %255 = sbr.rel (%p253) target = $region16
        $region15: #{tpu_custom_call.1} parent=11 // pred_region
          _
        $region16: #{tpu_custom_call.1} parent=11 // pred_fallthru
          _
        // Predicated region
        $region17: #{tpu_custom_call.1} parent=11 // pred_check
          %p256 = pneg %p86
        $region18: #{tpu_custom_call.1} parent=11 // pred_check_branch
          %258 = sbr.rel (%p256) target = $region20
        $region19: #{tpu_custom_call.1} parent=11 // pred_region
          _
        $region20: #{tpu_custom_call.1} parent=11 // pred_fallthru
          _
        // Predicated region
        $region21: #{tpu_custom_call.1} parent=11 // pred_check
          %p259 = pneg %p107
        $region22: #{tpu_custom_call.1} parent=11 // pred_check_branch
          %261 = sbr.rel (%p259) target = $region24
        $region23: #{tpu_custom_call.1} parent=11 // pred_region
          _
        $region24: #{tpu_custom_call.1} parent=11 // pred_fallthru
          _
        // Predicated region
        $region25: #{tpu_custom_call.1} parent=11 // pred_check
          %p262 = pneg %p128
        $region26: #{tpu_custom_call.1} parent=11 // pred_check_branch
          %264 = sbr.rel (%p262) target = $region28
        $region27: #{tpu_custom_call.1} parent=11 // pred_region
          _
        $region28: #{tpu_custom_call.1} parent=11 // pred_fallthru
          _
        // Predicated region
        $region29: #{tpu_custom_call.1} parent=11 // pred_check
          %p265 = pneg %p149
        $region30: #{tpu_custom_call.1} parent=11 // pred_check_branch
          %267 = sbr.rel (%p265) target = $region32
        $region31: #{tpu_custom_call.1} parent=11 // pred_region
          _
        $region32: #{tpu_custom_call.1} parent=11 // pred_fallthru
          _
        // Predicated region
        $region33: #{tpu_custom_call.1} parent=11 // pred_check
          %p268 = pneg %p170
        $region34: #{tpu_custom_call.1} parent=11 // pred_check_branch
          %270 = sbr.rel (%p268) target = $region36
        $region35: #{tpu_custom_call.1} parent=11 // pred_region
          _
        $region36: #{tpu_custom_call.1} parent=11 // pred_fallthru
          _
        // Predicated region
        $region37: #{tpu_custom_call.1} parent=11 // pred_check
          %p271 = pneg %p191
        $region38: #{tpu_custom_call.1} parent=11 // pred_check_branch
          %273 = sbr.rel (%p271) target = $region40
        $region39: #{tpu_custom_call.1} parent=11 // pred_region
          _
        $region40: #{tpu_custom_call.1} parent=11 // pred_fallthru
          _
        // Predicated region
        $region41: #{tpu_custom_call.1} parent=11 // pred_check
          %p274 = pneg %p212
        $region42: #{tpu_custom_call.1} parent=11 // pred_check_branch
          %276 = sbr.rel (%p274) target = $region44
        $region43: #{tpu_custom_call.1} parent=11 // pred_region
          _
        $region44: #{tpu_custom_call.1} parent=11 // pred_fallthru
          _
      $region12: #{tpu_custom_call.1} parent=5 // pred_fallthru
        _
      %p277 = scmp.lt.s32.totalorder %s18, 2
      // Predicated region
      $region45: #{tpu_custom_call.1} parent=5 // pred_check
        %p278 = pneg %p277
      $region46: #{tpu_custom_call.1} parent=5 // pred_check_branch
        %280 = sbr.rel (%p278) target = $region48
      $region47: #{tpu_custom_call.1} parent=5 // pred_region
        // Predicated region
        $region49: #{tpu_custom_call.1} parent=47 // pred_check
          %p281 = pneg %p38
        $region50: #{tpu_custom_call.1} parent=47 // pred_check_branch
          %283 = sbr.rel (%p281) target = $region52
        $region51: #{tpu_custom_call.1} parent=47 // pred_region
          %s284 = smul.u32 2, %s18
          %p285 = scmp.lt.s32.totalorder %s284, 3
          %s286 = scalar_select %p285, %s284, 3
          %s287 = smul.addr %s286, 16
          %s288 = smul.addr %s287, 4
          %s289 = scalar_lea.vmem %s0, %s288
          %s290 = smul.u32 2, %s18
        $region52: #{tpu_custom_call.1} parent=47 // pred_fallthru
          _
      $region48: #{tpu_custom_call.1} parent=5 // pred_fallthru
        _
      %p291 = scmp.le.s32.totalorder 1, %s18
      %p292 = scmp.lt.s32.totalorder %s18, 3
      %p293 = pnand %p291, %p292
      %p294 = pneg %p293
      // Predicated region
      $region53: #{tpu_custom_call.1} parent=5 // pred_check
        _
      $region54: #{tpu_custom_call.1} parent=5 // pred_check_branch
        %296 = sbr.rel (%p293) target = $region56
      $region55: #{tpu_custom_call.1} parent=5 // pred_region
        %s297 = ssub.s32 %s18, 1
        %s298 = smul.u32 2, %s23
        %p299 = scmp.lt.s32.totalorder %s298, 3
        %s300 = scalar_select %p299, %s298, 3
        %s301 = smul.addr %s300, 16
        %s302 = smul.addr %s301, 4
        %s303 = scalar_lea.vmem %s0, %s302
        %p304 = pneg %p44
        %p305 = pneg %p41
        %p306 = pneg %p65
        %p307 = pneg %p62
        %p308 = pneg %p86
        %p309 = pneg %p83
        %p310 = pneg %p107
        %p311 = pneg %p104
        %p312 = pneg %p128
        %p313 = pneg %p125
        %p314 = pneg %p149
        %p315 = pneg %p146
        %p316 = pneg %p170
        %p317 = pneg %p167
        %p318 = pneg %p191
        %p319 = pneg %p188
        %p320 = pneg %p212
        %p321 = pneg %p209
        %p322 = pneg %p238
        %p323 = pneg %p235
        %s324 = sand.u32 %s225, 1
        %s325 = scalar_lea.sflag [#allocation4], %s324
        %s326 = sand.u32 %s225, 1
        %s327 = smul.addr %s326, 256
        %s328 = scalar_lea.vmem [#allocation3], %s327
        %s329 = smul.u32 2, %s23
        %p330 = scmp.lt.s32.totalorder %s329, 3
        %s331 = scalar_select %p330, %s329, 3
        %s332 = smul.addr %s331, 16
        %s333 = smul.addr %s332, 4
        %s334 = scalar_lea.vmem %s0, %s333
        %s335 = smul.u32 2, %s23
        %s336 = smul.u32 2, %s23
        %v338 = vld [vmem:[%s334] sm:$0xff]
        %v339 = vld [vmem:[%s334 + $0x8] sm:$0xff]
        %v340 = vld [vmem:[%s334 + $0x10] sm:$0xff]
        %v341 = vld [vmem:[%s334 + $0x18] sm:$0xff]
        %v342 = vld [vmem:[%s334 + $0x20] sm:$0xff]
        %v343 = vld [vmem:[%s334 + $0x28] sm:$0xff]
        %v344 = vld [vmem:[%s334 + $0x30] sm:$0xff]
        %v345 = vld [vmem:[%s334 + $0x38] sm:$0xff]
        %v346 = vld [vmem:[%s334 + $0x40] sm:$0xff]
        %v347 = vld [vmem:[%s334 + $0x48] sm:$0xff]
        %v348 = vld [vmem:[%s334 + $0x50] sm:$0xff]
        %v349 = vld [vmem:[%s334 + $0x58] sm:$0xff]
        %v350 = vld [vmem:[%s334 + $0x60] sm:$0xff]
        %v351 = vld [vmem:[%s334 + $0x68] sm:$0xff]
        %v352 = vld [vmem:[%s334 + $0x70] sm:$0xff]
        %v353 = vld [vmem:[%s334 + $0x78] sm:$0xff]
        %v354 = vld [vmem:[%s1] sm:$0xf]
        %v355 = vld [vmem:[%s1 + $0x4] sm:$0xf]
        %v356 = vld [vmem:[%s1 + $0x8] sm:$0xf]
        %v357 = vld [vmem:[%s1 + $0xc] sm:$0xf]
        %v358 = vld [vmem:[%s1 + $0x10] sm:$0xf]
        %v359 = vld [vmem:[%s1 + $0x14] sm:$0xf]
        %v360 = vld [vmem:[%s1 + $0x18] sm:$0xf]
        %v361 = vld [vmem:[%s1 + $0x1c] sm:$0xf]
        %v362 = vld [vmem:[%s1 + $0x20] sm:$0xf]
        %v363 = vld [vmem:[%s1 + $0x24] sm:$0xf]
        %v364 = vld [vmem:[%s1 + $0x28] sm:$0xf]
        %v365 = vld [vmem:[%s1 + $0x2c] sm:$0xf]
        %v366 = vld [vmem:[%s1 + $0x30] sm:$0xf]
        %v367 = vld [vmem:[%s1 + $0x34] sm:$0xf]
        %v368 = vld [vmem:[%s1 + $0x38] sm:$0xf]
        %v369 = vld [vmem:[%s1 + $0x3c] sm:$0xf]
        %v370 = vld [vmem:[%s1 + $0x40] sm:$0xf]
        %v371 = vld [vmem:[%s1 + $0x44] sm:$0xf]
        %v372 = vld [vmem:[%s1 + $0x48] sm:$0xf]
        %v373 = vld [vmem:[%s1 + $0x4c] sm:$0xf]
        %v374 = vld [vmem:[%s1 + $0x50] sm:$0xf]
        %v375 = vld [vmem:[%s1 + $0x54] sm:$0xf]
        %v376 = vld [vmem:[%s1 + $0x58] sm:$0xf]
        %v377 = vld [vmem:[%s1 + $0x5c] sm:$0xf]
        %v378 = vld [vmem:[%s1 + $0x60] sm:$0xf]
        %v379 = vld [vmem:[%s1 + $0x64] sm:$0xf]
        %v380 = vld [vmem:[%s1 + $0x68] sm:$0xf]
        %v381 = vld [vmem:[%s1 + $0x6c] sm:$0xf]
        %v382 = vld [vmem:[%s1 + $0x70] sm:$0xf]
        %v383 = vld [vmem:[%s1 + $0x74] sm:$0xf]
        %v384 = vld [vmem:[%s1 + $0x78] sm:$0xf]
        %v385 = vld [vmem:[%s1 + $0x7c] sm:$0xf]
        %v386 = vld [vmem:[%s2] sm:$0x1]
        %v388 = vlaneseq
        %v389 = vshrl.u32 %v388, 7
        %v390 = vsub.s32 0, %v389
        %v391 = vrot.slane %v386, %v390
        %v409 = vunpack.c.l.b16 %v338
        %v410 = vunpack.c.h.b16 %v338
        %v411 = vunpack.c.l.b16 %v339
        %v412 = vunpack.c.h.b16 %v339
        %v413 = vunpack.c.l.b16 %v340
        %v414 = vunpack.c.h.b16 %v340
        %v415 = vunpack.c.l.b16 %v341
        %v416 = vunpack.c.h.b16 %v341
        %v417 = vunpack.c.l.b16 %v342
        %v418 = vunpack.c.h.b16 %v342
        %v419 = vunpack.c.l.b16 %v343
        %v420 = vunpack.c.h.b16 %v343
        %v421 = vunpack.c.l.b16 %v344
        %v422 = vunpack.c.h.b16 %v344
        %v423 = vunpack.c.l.b16 %v345
        %v424 = vunpack.c.h.b16 %v345
        %v425 = vunpack.c.l.b16 %v346
        %v426 = vunpack.c.h.b16 %v346
        %v427 = vunpack.c.l.b16 %v347
        %v428 = vunpack.c.h.b16 %v347
        %v429 = vunpack.c.l.b16 %v348
        %v430 = vunpack.c.h.b16 %v348
        %v431 = vunpack.c.l.b16 %v349
        %v432 = vunpack.c.h.b16 %v349
        %v433 = vunpack.c.l.b16 %v350
        %v434 = vunpack.c.h.b16 %v350
        %v435 = vunpack.c.l.b16 %v351
        %v436 = vunpack.c.h.b16 %v351
        %v437 = vunpack.c.l.b16 %v352
        %v438 = vunpack.c.h.b16 %v352
        %v439 = vunpack.c.l.b16 %v353
        %v440 = vunpack.c.h.b16 %v353
        %v441 = vpack.c.b16 %v411, %v409
        %v442 = vpack.c.b16 %v412, %v410
        %v443 = vpack.c.b16 %v415, %v413
        %v444 = vpack.c.b16 %v416, %v414
        %v445 = vpack.c.b16 %v419, %v417
        %v446 = vpack.c.b16 %v420, %v418
        %v447 = vpack.c.b16 %v423, %v421
        %v448 = vpack.c.b16 %v424, %v422
        %v449 = vpack.c.b16 %v427, %v425
        %v450 = vpack.c.b16 %v428, %v426
        %v451 = vpack.c.b16 %v431, %v429
        %v452 = vpack.c.b16 %v432, %v430
        %v453 = vpack.c.b16 %v435, %v433
        %v454 = vpack.c.b16 %v436, %v434
        %v455 = vpack.c.b16 %v439, %v437
        %v456 = vpack.c.b16 %v440, %v438
        %v505 = vunpack.c.l.b16 %v354
        %v506 = vunpack.c.l.b16 %v355
        %v507 = vunpack.c.l.b16 %v356
        %v508 = vunpack.c.l.b16 %v357
        %v509 = vunpack.c.l.b16 %v358
        %v510 = vunpack.c.l.b16 %v359
        %v511 = vunpack.c.l.b16 %v360
        %v512 = vunpack.c.l.b16 %v361
        %v513 = vunpack.c.l.b16 %v362
        %v514 = vunpack.c.l.b16 %v363
        %v515 = vunpack.c.l.b16 %v364
        %v516 = vunpack.c.l.b16 %v365
        %v517 = vunpack.c.l.b16 %v366
        %v518 = vunpack.c.l.b16 %v367
        %v519 = vunpack.c.l.b16 %v368
        %v520 = vunpack.c.l.b16 %v369
        %v521 = vunpack.c.l.b16 %v370
        %v522 = vunpack.c.l.b16 %v371
        %v523 = vunpack.c.l.b16 %v372
        %v524 = vunpack.c.l.b16 %v373
        %v525 = vunpack.c.l.b16 %v374
        %v526 = vunpack.c.l.b16 %v375
        %v527 = vunpack.c.l.b16 %v376
        %v528 = vunpack.c.l.b16 %v377
        %v529 = vunpack.c.l.b16 %v378
        %v530 = vunpack.c.l.b16 %v379
        %v531 = vunpack.c.l.b16 %v380
        %v532 = vunpack.c.l.b16 %v381
        %v533 = vunpack.c.l.b16 %v382
        %v534 = vunpack.c.l.b16 %v383
        %v535 = vunpack.c.l.b16 %v384
        %v536 = vunpack.c.l.b16 %v385
        %v537 = vpack.c.b16 %v506, %v505
        %v538 = vpack.c.b16 %v508, %v507
        %v539 = vpack.c.b16 %v510, %v509
        %v540 = vpack.c.b16 %v512, %v511
        %v541 = vpack.c.b16 %v514, %v513
        %v542 = vpack.c.b16 %v516, %v515
        %v543 = vpack.c.b16 %v518, %v517
        %v544 = vpack.c.b16 %v520, %v519
        %v545 = vpack.c.b16 %v522, %v521
        %v546 = vpack.c.b16 %v524, %v523
        %v547 = vpack.c.b16 %v526, %v525
        %v548 = vpack.c.b16 %v528, %v527
        %v549 = vpack.c.b16 %v530, %v529
        %v550 = vpack.c.b16 %v532, %v531
        %v551 = vpack.c.b16 %v534, %v533
        %v552 = vpack.c.b16 %v536, %v535
        %569 = vmatprep.subr.bf16.mxu0 0
        %570 = vmatpush1.bf16.msra.mxu0 %v537
        %571 = vmatprep.subr.bf16.mxu0 0
        %572 = vmatpush1.bf16.msra.mxu0 %v538
        %573 = vmatprep.subr.bf16.mxu0 0
        %574 = vmatpush1.bf16.msra.mxu0 %v539
        %575 = vmatprep.subr.bf16.mxu0 0
        %576 = vmatpush1.bf16.msra.mxu0 %v540
        %577 = vmatprep.subr.bf16.mxu0 0
        %578 = vmatpush1.bf16.msra.mxu0 %v541
        %579 = vmatprep.subr.bf16.mxu0 0
        %580 = vmatpush1.bf16.msra.mxu0 %v542
        %581 = vmatprep.subr.bf16.mxu0 0
        %582 = vmatpush1.bf16.msra.mxu0 %v543
        %583 = vmatprep.subr.bf16.mxu0 0
        %584 = vmatpush1.bf16.msra.mxu0 %v544
        %585 = vmatprep.subr.bf16.mxu0 0
        %586 = vmatpush1.bf16.msra.mxu0 %v545
        %587 = vmatprep.subr.bf16.mxu0 0
        %588 = vmatpush1.bf16.msra.mxu0 %v546
        %589 = vmatprep.subr.bf16.mxu0 0
        %590 = vmatpush1.bf16.msra.mxu0 %v547
        %591 = vmatprep.subr.bf16.mxu0 0
        %592 = vmatpush1.bf16.msra.mxu0 %v548
        %593 = vmatprep.subr.bf16.mxu0 0
        %594 = vmatpush1.bf16.msra.mxu0 %v549
        %595 = vmatprep.subr.bf16.mxu0 0
        %596 = vmatpush1.bf16.msra.mxu0 %v550
        %597 = vmatprep.subr.bf16.mxu0 0
        %598 = vmatpush1.bf16.msra.mxu0 %v551
        %599 = vmatprep.subr.bf16.mxu0 0
        %600 = vmatpush1.bf16.msra.mxu0 %v552
        %601 = vmatprep.mubr.bf16.mxu0 %v442
        %602 = vmatmul.mubr.bf16.gmra.mrb[0].mxu0 %v441
        %v603 = vpop.f32.mrb[0].mxu0
        %v604 = vadd.f32 %v391, %v603
        %v605 = vpop.f32.mrb[0].mxu0
        %v606 = vpop.f32.mrb[0].mxu0
        %v607 = vadd.f32 %v391, %v606
        %v608 = vpop.f32.mrb[0].mxu0
        %609 = vmatprep.mubr.bf16.mxu0 %v444
        %610 = vmatmul.mubr.bf16.gmra.mrb[0].mxu0 %v443
        %v611 = vpop.f32.mrb[0].mxu0
        %v612 = vadd.f32 %v391, %v611
        %v613 = vpop.f32.mrb[0].mxu0
        %v614 = vpop.f32.mrb[0].mxu0
        %v615 = vadd.f32 %v391, %v614
        %v616 = vpop.f32.mrb[0].mxu0
        %617 = vmatprep.mubr.bf16.mxu0 %v446
        %618 = vmatmul.mubr.bf16.gmra.mrb[0].mxu0 %v445
        %v619 = vpop.f32.mrb[0].mxu0
        %v620 = vadd.f32 %v391, %v619
        %v621 = vpop.f32.mrb[0].mxu0
        %v622 = vpop.f32.mrb[0].mxu0
        %v623 = vadd.f32 %v391, %v622
        %v624 = vpop.f32.mrb[0].mxu0
        %625 = vmatprep.mubr.bf16.mxu0 %v448
        %626 = vmatmul.mubr.bf16.gmra.mrb[0].mxu0 %v447
        %v627 = vpop.f32.mrb[0].mxu0
        %v628 = vadd.f32 %v391, %v627
        %v629 = vpop.f32.mrb[0].mxu0
        %v630 = vpop.f32.mrb[0].mxu0
        %v631 = vadd.f32 %v391, %v630
        %v632 = vpop.f32.mrb[0].mxu0
        %633 = vmatprep.mubr.bf16.mxu0 %v450
        %634 = vmatmul.mubr.bf16.gmra.mrb[0].mxu0 %v449
        %v635 = vpop.f32.mrb[0].mxu0
        %v636 = vadd.f32 %v391, %v635
        %v637 = vpop.f32.mrb[0].mxu0
        %v638 = vpop.f32.mrb[0].mxu0
        %v639 = vadd.f32 %v391, %v638
        %v640 = vpop.f32.mrb[0].mxu0
        %641 = vmatprep.mubr.bf16.mxu0 %v452
        %642 = vmatmul.mubr.bf16.gmra.mrb[0].mxu0 %v451
        %v643 = vpop.f32.mrb[0].mxu0
        %v644 = vadd.f32 %v391, %v643
        %v645 = vpop.f32.mrb[0].mxu0
        %v646 = vpop.f32.mrb[0].mxu0
        %v647 = vadd.f32 %v391, %v646
        %v648 = vpop.f32.mrb[0].mxu0
        %649 = vmatprep.mubr.bf16.mxu0 %v454
        %650 = vmatmul.mubr.bf16.gmra.mrb[0].mxu0 %v453
        %v651 = vpop.f32.mrb[0].mxu0
        %v652 = vadd.f32 %v391, %v651
        %v653 = vpop.f32.mrb[0].mxu0
        %v654 = vpop.f32.mrb[0].mxu0
        %v655 = vadd.f32 %v391, %v654
        %v656 = vpop.f32.mrb[0].mxu0
        %657 = vmatprep.mubr.bf16.mxu0 %v456
        %658 = vmatmul.mubr.bf16.gmra.mrb[0].mxu0 %v455
        %v659 = vpop.f32.mrb[0].mxu0
        %v660 = vadd.f32 %v391, %v659
        %v661 = vpop.f32.mrb[0].mxu0
        %v662 = vpop.f32.mrb[0].mxu0
        %v663 = vadd.f32 %v391, %v662
        %v664 = vpop.f32.mrb[0].mxu0
        %665 = vdwg.mxu0
        %v666 = vmax.f32 %v604, 0.0
        %v667 = vmax.f32 %v607, 0.0
        %v668 = vmax.f32 %v612, 0.0
        %v669 = vmax.f32 %v615, 0.0
        %v670 = vmax.f32 %v620, 0.0
        %v671 = vmax.f32 %v623, 0.0
        %v672 = vmax.f32 %v628, 0.0
        %v673 = vmax.f32 %v631, 0.0
        %v674 = vmax.f32 %v636, 0.0
        %v675 = vmax.f32 %v639, 0.0
        %v676 = vmax.f32 %v644, 0.0
        %v677 = vmax.f32 %v647, 0.0
        %v678 = vmax.f32 %v652, 0.0
        %v679 = vmax.f32 %v655, 0.0
        %v680 = vmax.f32 %v660, 0.0
        %v681 = vmax.f32 %v663, 0.0
        %v698 = vrot.slane %v666, 7
        %v699 = vrot.slane %v667, 7
        %v700 = vrot.slane %v668, 7
        %v701 = vrot.slane %v669, 7
        %v702 = vrot.slane %v670, 7
        %v703 = vrot.slane %v671, 7
        %v704 = vrot.slane %v672, 7
        %v705 = vrot.slane %v673, 7
        %v706 = vrot.slane %v674, 7
        %v707 = vrot.slane %v675, 7
        %v708 = vrot.slane %v676, 7
        %v709 = vrot.slane %v677, 7
        %v710 = vrot.slane %v678, 7
        %v711 = vrot.slane %v679, 7
        %v712 = vrot.slane %v680, 7
        %v713 = vrot.slane %v681, 7
        %vm730 = vcmask 1040384
        %v731 = vsel %vm730, 0.0, %v698
        %v732 = vsel %vm730, 0.0, %v699
        %v733 = vsel %vm730, 0.0, %v700
        %v734 = vsel %vm730, 0.0, %v701
        %v735 = vsel %vm730, 0.0, %v702
        %v736 = vsel %vm730, 0.0, %v703
        %v737 = vsel %vm730, 0.0, %v704
        %v738 = vsel %vm730, 0.0, %v705
        %v739 = vsel %vm730, 0.0, %v706
        %v740 = vsel %vm730, 0.0, %v707
        %v741 = vsel %vm730, 0.0, %v708
        %v742 = vsel %vm730, 0.0, %v709
        %v743 = vsel %vm730, 0.0, %v710
        %v744 = vsel %vm730, 0.0, %v711
        %v745 = vsel %vm730, 0.0, %v712
        %v746 = vsel %vm730, 0.0, %v713
        %v747 = vrot.slane %v666, 1
        %v748 = vrot.slane %v667, 1
        %v749 = vrot.slane %v668, 1
        %v750 = vrot.slane %v669, 1
        %v751 = vrot.slane %v670, 1
        %v752 = vrot.slane %v671, 1
        %v753 = vrot.slane %v672, 1
        %v754 = vrot.slane %v673, 1
        %v755 = vrot.slane %v674, 1
        %v756 = vrot.slane %v675, 1
        %v757 = vrot.slane %v676, 1
        %v758 = vrot.slane %v677, 1
        %v759 = vrot.slane %v678, 1
        %v760 = vrot.slane %v679, 1
        %v761 = vrot.slane %v680, 1
        %v762 = vrot.slane %v681, 1
        %vm779 = vcmask 1046528
        %v780 = vsel %vm779, %v747, 0.0
        %v781 = vsel %vm779, %v748, 0.0
        %v782 = vsel %vm779, %v749, 0.0
        %v783 = vsel %vm779, %v750, 0.0
        %v784 = vsel %vm779, %v751, 0.0
        %v785 = vsel %vm779, %v752, 0.0
        %v786 = vsel %vm779, %v753, 0.0
        %v787 = vsel %vm779, %v754, 0.0
        %v788 = vsel %vm779, %v755, 0.0
        %v789 = vsel %vm779, %v756, 0.0
        %v790 = vsel %vm779, %v757, 0.0
        %v791 = vsel %vm779, %v758, 0.0
        %v792 = vsel %vm779, %v759, 0.0
        %v793 = vsel %vm779, %v760, 0.0
        %v794 = vsel %vm779, %v761, 0.0
        %v795 = vsel %vm779, %v762, 0.0
        %v796 = vpack.c.bf16 %v731, %v731
        %v797 = vpack.c.bf16 %v732, %v732
        %v798 = vpack.c.bf16 %v733, %v733
        %v799 = vpack.c.bf16 %v734, %v734
        %v800 = vpack.c.bf16 %v735, %v735
        %v801 = vpack.c.bf16 %v736, %v736
        %v802 = vpack.c.bf16 %v737, %v737
        %v803 = vpack.c.bf16 %v738, %v738
        %v804 = vpack.c.bf16 %v739, %v739
        %v805 = vpack.c.bf16 %v740, %v740
        %v806 = vpack.c.bf16 %v741, %v741
        %v807 = vpack.c.bf16 %v742, %v742
        %v808 = vpack.c.bf16 %v743, %v743
        %v809 = vpack.c.bf16 %v744, %v744
        %v810 = vpack.c.bf16 %v745, %v745
        %v811 = vpack.c.bf16 %v746, %v746
        %v812 = vpack.c.bf16 %v666, %v666
        %v813 = vpack.c.bf16 %v667, %v667
        %v814 = vpack.c.bf16 %v668, %v668
        %v815 = vpack.c.bf16 %v669, %v669
        %v816 = vpack.c.bf16 %v670, %v670
        %v817 = vpack.c.bf16 %v671, %v671
        %v818 = vpack.c.bf16 %v672, %v672
        %v819 = vpack.c.bf16 %v673, %v673
        %v820 = vpack.c.bf16 %v674, %v674
        %v821 = vpack.c.bf16 %v675, %v675
        %v822 = vpack.c.bf16 %v676, %v676
        %v823 = vpack.c.bf16 %v677, %v677
        %v824 = vpack.c.bf16 %v678, %v678
        %v825 = vpack.c.bf16 %v679, %v679
        %v826 = vpack.c.bf16 %v680, %v680
        %v827 = vpack.c.bf16 %v681, %v681
        %v828 = vpack.c.bf16 %v780, %v780
        %v829 = vpack.c.bf16 %v781, %v781
        %v830 = vpack.c.bf16 %v782, %v782
        %v831 = vpack.c.bf16 %v783, %v783
        %v832 = vpack.c.bf16 %v784, %v784
        %v833 = vpack.c.bf16 %v785, %v785
        %v834 = vpack.c.bf16 %v786, %v786
        %v835 = vpack.c.bf16 %v787, %v787
        %v836 = vpack.c.bf16 %v788, %v788
        %v837 = vpack.c.bf16 %v789, %v789
        %v838 = vpack.c.bf16 %v790, %v790
        %v839 = vpack.c.bf16 %v791, %v791
        %v840 = vpack.c.bf16 %v792, %v792
        %v841 = vpack.c.bf16 %v793, %v793
        %v842 = vpack.c.bf16 %v794, %v794
        %v843 = vpack.c.bf16 %v795, %v795
        %860 = vrot.lane.b32.xlu0 %v812, 64
        %v861 = vpop.permute.xlu0 %860
        %862 = vrot.lane.b32.xlu0 %v813, 64
        %v863 = vpop.permute.xlu0 %862
        %864 = vrot.lane.b32.xlu0 %v814, 64
        %v865 = vpop.permute.xlu0 %864
        %866 = vrot.lane.b32.xlu0 %v815, 64
        %v867 = vpop.permute.xlu0 %866
        %868 = vrot.lane.b32.xlu0 %v816, 64
        %v869 = vpop.permute.xlu0 %868
        %870 = vrot.lane.b32.xlu0 %v817, 64
        %v871 = vpop.permute.xlu0 %870
        %872 = vrot.lane.b32.xlu0 %v818, 64
        %v873 = vpop.permute.xlu0 %872
        %874 = vrot.lane.b32.xlu0 %v819, 64
        %v875 = vpop.permute.xlu0 %874
        %876 = vrot.lane.b32.xlu0 %v820, 64
        %v877 = vpop.permute.xlu0 %876
        %878 = vrot.lane.b32.xlu0 %v821, 64
        %v879 = vpop.permute.xlu0 %878
        %880 = vrot.lane.b32.xlu0 %v822, 64
        %v881 = vpop.permute.xlu0 %880
        %882 = vrot.lane.b32.xlu0 %v823, 64
        %v883 = vpop.permute.xlu0 %882
        %884 = vrot.lane.b32.xlu0 %v824, 64
        %v885 = vpop.permute.xlu0 %884
        %886 = vrot.lane.b32.xlu0 %v825, 64
        %v887 = vpop.permute.xlu0 %886
        %888 = vrot.lane.b32.xlu0 %v826, 64
        %v889 = vpop.permute.xlu0 %888
        %890 = vrot.lane.b32.xlu0 %v827, 64
        %v891 = vpop.permute.xlu0 %890
        %vm892 = vcmask 523264
        %v895 = vsel %vm892, %v796, %v861
        %v898 = vsel %vm892, %v797, %v863
        %v901 = vsel %vm892, %v798, %v865
        %v904 = vsel %vm892, %v799, %v867
        %v907 = vsel %vm892, %v800, %v869
        %v910 = vsel %vm892, %v801, %v871
        %v913 = vsel %vm892, %v802, %v873
        %v916 = vsel %vm892, %v803, %v875
        %v919 = vsel %vm892, %v804, %v877
        %v922 = vsel %vm892, %v805, %v879
        %v925 = vsel %vm892, %v806, %v881
        %v928 = vsel %vm892, %v807, %v883
        %v931 = vsel %vm892, %v808, %v885
        %v934 = vsel %vm892, %v809, %v887
        %v937 = vsel %vm892, %v810, %v889
        %v940 = vsel %vm892, %v811, %v891
        %v943 = vsel %vm892, %v828, 0
        %v945 = vsel %vm892, %v829, 0
        %v947 = vsel %vm892, %v830, 0
        %v949 = vsel %vm892, %v831, 0
        %v951 = vsel %vm892, %v832, 0
        %v953 = vsel %vm892, %v833, 0
        %v955 = vsel %vm892, %v834, 0
        %v957 = vsel %vm892, %v835, 0
        %v959 = vsel %vm892, %v836, 0
        %v961 = vsel %vm892, %v837, 0
        %v963 = vsel %vm892, %v838, 0
        %v965 = vsel %vm892, %v839, 0
        %v967 = vsel %vm892, %v840, 0
        %v969 = vsel %vm892, %v841, 0
        %v971 = vsel %vm892, %v842, 0
        %v973 = vsel %vm892, %v843, 0
        %v1006 = vunpack.c.l.b16 %v895
        %v1007 = vunpack.c.l.b16 %v943
        %v1008 = vunpack.c.l.b16 %v898
        %v1009 = vunpack.c.l.b16 %v945
        %v1010 = vunpack.c.l.b16 %v901
        %v1011 = vunpack.c.l.b16 %v947
        %v1012 = vunpack.c.l.b16 %v904
        %v1013 = vunpack.c.l.b16 %v949
        %v1014 = vunpack.c.l.b16 %v907
        %v1015 = vunpack.c.l.b16 %v951
        %v1016 = vunpack.c.l.b16 %v910
        %v1017 = vunpack.c.l.b16 %v953
        %v1018 = vunpack.c.l.b16 %v913
        %v1019 = vunpack.c.l.b16 %v955
        %v1020 = vunpack.c.l.b16 %v916
        %v1021 = vunpack.c.l.b16 %v957
        %v1022 = vunpack.c.l.b16 %v919
        %v1023 = vunpack.c.l.b16 %v959
        %v1024 = vunpack.c.l.b16 %v922
        %v1025 = vunpack.c.l.b16 %v961
        %v1026 = vunpack.c.l.b16 %v925
        %v1027 = vunpack.c.l.b16 %v963
        %v1028 = vunpack.c.l.b16 %v928
        %v1029 = vunpack.c.l.b16 %v965
        %v1030 = vunpack.c.l.b16 %v931
        %v1031 = vunpack.c.l.b16 %v967
        %v1032 = vunpack.c.l.b16 %v934
        %v1033 = vunpack.c.l.b16 %v969
        %v1034 = vunpack.c.l.b16 %v937
        %v1035 = vunpack.c.l.b16 %v971
        %v1036 = vunpack.c.l.b16 %v940
        %v1037 = vunpack.c.l.b16 %v973
        %v1038 = vpack.c.b16 %v1007, %v1006
        %v1039 = vpack.c.b16 %v1009, %v1008
        %v1040 = vpack.c.b16 %v1011, %v1010
        %v1041 = vpack.c.b16 %v1013, %v1012
        %v1042 = vpack.c.b16 %v1015, %v1014
        %v1043 = vpack.c.b16 %v1017, %v1016
        %v1044 = vpack.c.b16 %v1019, %v1018
        %v1045 = vpack.c.b16 %v1021, %v1020
        %v1046 = vpack.c.b16 %v1023, %v1022
        %v1047 = vpack.c.b16 %v1025, %v1024
        %v1048 = vpack.c.b16 %v1027, %v1026
        %v1049 = vpack.c.b16 %v1029, %v1028
        %v1050 = vpack.c.b16 %v1031, %v1030
        %v1051 = vpack.c.b16 %v1033, %v1032
        %v1052 = vpack.c.b16 %v1035, %v1034
        %v1053 = vpack.c.b16 %v1037, %v1036
        %s1070 = scalar_lea.vmem [#allocation2], 8
        %1071 = vst [vmem:[%s1070] sm:$0xff] %v1038
        %1072 = vst [vmem:[%s1070 + $0x8] sm:$0xff] %v1039
        %1073 = vst [vmem:[%s1070 + $0x10] sm:$0xff] %v1040
        %1074 = vst [vmem:[%s1070 + $0x18] sm:$0xff] %v1041
        %1075 = vst [vmem:[%s1070 + $0x20] sm:$0xff] %v1042
        %1076 = vst [vmem:[%s1070 + $0x28] sm:$0xff] %v1043
        %1077 = vst [vmem:[%s1070 + $0x30] sm:$0xff] %v1044
        %1078 = vst [vmem:[%s1070 + $0x38] sm:$0xff] %v1045
        %1079 = vst [vmem:[%s1070 + $0x50] sm:$0xff] %v1046
        %1080 = vst [vmem:[%s1070 + $0x58] sm:$0xff] %v1047
        %1081 = vst [vmem:[%s1070 + $0x60] sm:$0xff] %v1048
        %1082 = vst [vmem:[%s1070 + $0x68] sm:$0xff] %v1049
        %1083 = vst [vmem:[%s1070 + $0x70] sm:$0xff] %v1050
        %1084 = vst [vmem:[%s1070 + $0x78] sm:$0xff] %v1051
        %1085 = vst [vmem:[%s1070 + $0x80] sm:$0xff] %v1052
        %1086 = vst [vmem:[%s1070 + $0x88] sm:$0xff] %v1053
        %1087 = vst [vmem:[#allocation2] sm:$0xff] 0
        %1088 = vst [vmem:[#allocation2 + $0x50] sm:$0xff] 0
        %s1089 = scalar_lea.vmem [#allocation2], 72
        %1090 = vst [vmem:[%s1089] sm:$0xff] 0
        %1091 = vst [vmem:[%s1089 + $0x50] sm:$0xff] 0
        %v1092 = vld [vmem:[#allocation2] sm:$0xff]
        %v1093 = vld [vmem:[#allocation2 + $0x8] sm:$0xff]
        %v1094 = vld [vmem:[#allocation2 + $0x10] sm:$0xff]
        %v1095 = vld [vmem:[#allocation2 + $0x18] sm:$0xff]
        %v1096 = vld [vmem:[#allocation2 + $0x20] sm:$0xff]
        %v1097 = vld [vmem:[#allocation2 + $0x28] sm:$0xff]
        %v1098 = vld [vmem:[#allocation2 + $0x30] sm:$0xff]
        %v1099 = vld [vmem:[#allocation2 + $0x38] sm:$0xff]
        %v1100 = vld [vmem:[#allocation2 + $0x50] sm:$0xff]
        %v1101 = vld [vmem:[#allocation2 + $0x58] sm:$0xff]
        %v1102 = vld [vmem:[#allocation2 + $0x60] sm:$0xff]
        %v1103 = vld [vmem:[#allocation2 + $0x68] sm:$0xff]
        %v1104 = vld [vmem:[#allocation2 + $0x70] sm:$0xff]
        %v1105 = vld [vmem:[#allocation2 + $0x78] sm:$0xff]
        %v1106 = vld [vmem:[#allocation2 + $0x80] sm:$0xff]
        %v1107 = vld [vmem:[#allocation2 + $0x88] sm:$0xff]
        %v1108 = vld [vmem:[%s3] sm:$0xf]
        %v1109 = vld [vmem:[%s3 + $0x4] sm:$0xf]
        %v1110 = vld [vmem:[%s3 + $0x8] sm:$0xf]
        %v1111 = vld [vmem:[%s3 + $0xc] sm:$0xf]
        %v1112 = vld [vmem:[%s3 + $0x10] sm:$0xf]
        %v1113 = vld [vmem:[%s3 + $0x14] sm:$0xf]
        %v1114 = vld [vmem:[%s3 + $0x18] sm:$0xf]
        %v1115 = vld [vmem:[%s3 + $0x1c] sm:$0xf]
        %v1116 = vld [vmem:[%s3 + $0x20] sm:$0xf]
        %v1117 = vld [vmem:[%s3 + $0x24] sm:$0xf]
        %v1118 = vld [vmem:[%s3 + $0x28] sm:$0xf]
        %v1119 = vld [vmem:[%s3 + $0x2c] sm:$0xf]
        %v1120 = vld [vmem:[%s3 + $0x30] sm:$0xf]
        %v1121 = vld [vmem:[%s3 + $0x34] sm:$0xf]
        %v1122 = vld [vmem:[%s3 + $0x38] sm:$0xf]
        %v1123 = vld [vmem:[%s3 + $0x3c] sm:$0xf]
        %v1124 = vld [vmem:[%s3 + $0x40] sm:$0xf]
        %v1125 = vld [vmem:[%s3 + $0x44] sm:$0xf]
        %v1126 = vld [vmem:[%s3 + $0x48] sm:$0xf]
        %v1127 = vld [vmem:[%s3 + $0x4c] sm:$0xf]
        %v1128 = vld [vmem:[%s3 + $0x50] sm:$0xf]
        %v1129 = vld [vmem:[%s3 + $0x54] sm:$0xf]
        %v1130 = vld [vmem:[%s3 + $0x58] sm:$0xf]
        %v1131 = vld [vmem:[%s3 + $0x5c] sm:$0xf]
        %v1132 = vld [vmem:[%s3 + $0x60] sm:$0xf]
        %v1133 = vld [vmem:[%s3 + $0x64] sm:$0xf]
        %v1134 = vld [vmem:[%s3 + $0x68] sm:$0xf]
        %v1135 = vld [vmem:[%s3 + $0x6c] sm:$0xf]
        %v1136 = vld [vmem:[%s3 + $0x70] sm:$0xf]
        %v1137 = vld [vmem:[%s3 + $0x74] sm:$0xf]
        %v1138 = vld [vmem:[%s3 + $0x78] sm:$0xf]
        %v1139 = vld [vmem:[%s3 + $0x7c] sm:$0xf]
        %v1140 = vld [vmem:[%s1070] sm:$0xff]
        %v1141 = vld [vmem:[%s1070 + $0x8] sm:$0xff]
        %v1142 = vld [vmem:[%s1070 + $0x10] sm:$0xff]
        %v1143 = vld [vmem:[%s1070 + $0x18] sm:$0xff]
        %v1144 = vld [vmem:[%s1070 + $0x20] sm:$0xff]
        %v1145 = vld [vmem:[%s1070 + $0x28] sm:$0xff]
        %v1146 = vld [vmem:[%s1070 + $0x30] sm:$0xff]
        %v1147 = vld [vmem:[%s1070 + $0x38] sm:$0xff]
        %v1148 = vld [vmem:[%s1070 + $0x50] sm:$0xff]
        %v1149 = vld [vmem:[%s1070 + $0x58] sm:$0xff]
        %v1150 = vld [vmem:[%s1070 + $0x60] sm:$0xff]
        %v1151 = vld [vmem:[%s1070 + $0x68] sm:$0xff]
        %v1152 = vld [vmem:[%s1070 + $0x70] sm:$0xff]
        %v1153 = vld [vmem:[%s1070 + $0x78] sm:$0xff]
        %v1154 = vld [vmem:[%s1070 + $0x80] sm:$0xff]
        %v1155 = vld [vmem:[%s1070 + $0x88] sm:$0xff]
        %s1156 = scalar_lea.vmem %s3, 128
        %v1157 = vld [vmem:[%s1156] sm:$0xf]
        %v1158 = vld [vmem:[%s1156 + $0x4] sm:$0xf]
        %v1159 = vld [vmem:[%s1156 + $0x8] sm:$0xf]
        %v1160 = vld [vmem:[%s1156 + $0xc] sm:$0xf]
        %v1161 = vld [vmem:[%s1156 + $0x10] sm:$0xf]
        %v1162 = vld [vmem:[%s1156 + $0x14] sm:$0xf]
        %v1163 = vld [vmem:[%s1156 + $0x18] sm:$0xf]
        %v1164 = vld [vmem:[%s1156 + $0x1c] sm:$0xf]
        %v1165 = vld [vmem:[%s1156 + $0x20] sm:$0xf]
        %v1166 = vld [vmem:[%s1156 + $0x24] sm:$0xf]
        %v1167 = vld [vmem:[%s1156 + $0x28] sm:$0xf]
        %v1168 = vld [vmem:[%s1156 + $0x2c] sm:$0xf]
        %v1169 = vld [vmem:[%s1156 + $0x30] sm:$0xf]
        %v1170 = vld [vmem:[%s1156 + $0x34] sm:$0xf]
        %v1171 = vld [vmem:[%s1156 + $0x38] sm:$0xf]
        %v1172 = vld [vmem:[%s1156 + $0x3c] sm:$0xf]
        %v1173 = vld [vmem:[%s1156 + $0x40] sm:$0xf]
        %v1174 = vld [vmem:[%s1156 + $0x44] sm:$0xf]
        %v1175 = vld [vmem:[%s1156 + $0x48] sm:$0xf]
        %v1176 = vld [vmem:[%s1156 + $0x4c] sm:$0xf]
        %v1177 = vld [vmem:[%s1156 + $0x50] sm:$0xf]
        %v1178 = vld [vmem:[%s1156 + $0x54] sm:$0xf]
        %v1179 = vld [vmem:[%s1156 + $0x58] sm:$0xf]
        %v1180 = vld [vmem:[%s1156 + $0x5c] sm:$0xf]
        %v1181 = vld [vmem:[%s1156 + $0x60] sm:$0xf]
        %v1182 = vld [vmem:[%s1156 + $0x64] sm:$0xf]
        %v1183 = vld [vmem:[%s1156 + $0x68] sm:$0xf]
        %v1184 = vld [vmem:[%s1156 + $0x6c] sm:$0xf]
        %v1185 = vld [vmem:[%s1156 + $0x70] sm:$0xf]
        %v1186 = vld [vmem:[%s1156 + $0x74] sm:$0xf]
        %v1187 = vld [vmem:[%s1156 + $0x78] sm:$0xf]
        %v1188 = vld [vmem:[%s1156 + $0x7c] sm:$0xf]
        %v1205 = vunpack.c.l.b16 %v1140
        %v1206 = vunpack.c.h.b16 %v1140
        %v1207 = vunpack.c.l.b16 %v1141
        %v1208 = vunpack.c.h.b16 %v1141
        %v1209 = vunpack.c.l.b16 %v1142
        %v1210 = vunpack.c.h.b16 %v1142
        %v1211 = vunpack.c.l.b16 %v1143
        %v1212 = vunpack.c.h.b16 %v1143
        %v1213 = vunpack.c.l.b16 %v1144
        %v1214 = vunpack.c.h.b16 %v1144
        %v1215 = vunpack.c.l.b16 %v1145
        %v1216 = vunpack.c.h.b16 %v1145
        %v1217 = vunpack.c.l.b16 %v1146
        %v1218 = vunpack.c.h.b16 %v1146
        %v1219 = vunpack.c.l.b16 %v1147
        %v1220 = vunpack.c.h.b16 %v1147
        %v1221 = vunpack.c.l.b16 %v1148
        %v1222 = vunpack.c.h.b16 %v1148
        %v1223 = vunpack.c.l.b16 %v1149
        %v1224 = vunpack.c.h.b16 %v1149
        %v1225 = vunpack.c.l.b16 %v1150
        %v1226 = vunpack.c.h.b16 %v1150
        %v1227 = vunpack.c.l.b16 %v1151
        %v1228 = vunpack.c.h.b16 %v1151
        %v1229 = vunpack.c.l.b16 %v1152
        %v1230 = vunpack.c.h.b16 %v1152
        %v1231 = vunpack.c.l.b16 %v1153
        %v1232 = vunpack.c.h.b16 %v1153
        %v1233 = vunpack.c.l.b16 %v1154
        %v1234 = vunpack.c.h.b16 %v1154
        %v1235 = vunpack.c.l.b16 %v1155
        %v1236 = vunpack.c.h.b16 %v1155
        %v1237 = vpack.c.b16 %v1207, %v1205
        %v1238 = vpack.c.b16 %v1208, %v1206
        %v1239 = vpack.c.b16 %v1211, %v1209
        %v1240 = vpack.c.b16 %v1212, %v1210
        %v1241 = vpack.c.b16 %v1215, %v1213
        %v1242 = vpack.c.b16 %v1216, %v1214
        %v1243 = vpack.c.b16 %v1219, %v1217
        %v1244 = vpack.c.b16 %v1220, %v1218
        %v1245 = vpack.c.b16 %v1223, %v1221
        %v1246 = vpack.c.b16 %v1224, %v1222
        %v1247 = vpack.c.b16 %v1227, %v1225
        %v1248 = vpack.c.b16 %v1228, %v1226
        %v1249 = vpack.c.b16 %v1231, %v1229
        %v1250 = vpack.c.b16 %v1232, %v1230
        %v1251 = vpack.c.b16 %v1235, %v1233
        %v1252 = vpack.c.b16 %v1236, %v1234
        %v1301 = vunpack.c.l.b16 %v1157
        %v1302 = vunpack.c.l.b16 %v1158
        %v1303 = vunpack.c.l.b16 %v1159
        %v1304 = vunpack.c.l.b16 %v1160
        %v1305 = vunpack.c.l.b16 %v1161
        %v1306 = vunpack.c.l.b16 %v1162
        %v1307 = vunpack.c.l.b16 %v1163
        %v1308 = vunpack.c.l.b16 %v1164
        %v1309 = vunpack.c.l.b16 %v1165
        %v1310 = vunpack.c.l.b16 %v1166
        %v1311 = vunpack.c.l.b16 %v1167
        %v1312 = vunpack.c.l.b16 %v1168
        %v1313 = vunpack.c.l.b16 %v1169
        %v1314 = vunpack.c.l.b16 %v1170
        %v1315 = vunpack.c.l.b16 %v1171
        %v1316 = vunpack.c.l.b16 %v1172
        %v1317 = vunpack.c.l.b16 %v1173
        %v1318 = vunpack.c.l.b16 %v1174
        %v1319 = vunpack.c.l.b16 %v1175
        %v1320 = vunpack.c.l.b16 %v1176
        %v1321 = vunpack.c.l.b16 %v1177
        %v1322 = vunpack.c.l.b16 %v1178
        %v1323 = vunpack.c.l.b16 %v1179
        %v1324 = vunpack.c.l.b16 %v1180
        %v1325 = vunpack.c.l.b16 %v1181
        %v1326 = vunpack.c.l.b16 %v1182
        %v1327 = vunpack.c.l.b16 %v1183
        %v1328 = vunpack.c.l.b16 %v1184
        %v1329 = vunpack.c.l.b16 %v1185
        %v1330 = vunpack.c.l.b16 %v1186
        %v1331 = vunpack.c.l.b16 %v1187
        %v1332 = vunpack.c.l.b16 %v1188
        %v1333 = vpack.c.b16 %v1302, %v1301
        %v1334 = vpack.c.b16 %v1304, %v1303
        %v1335 = vpack.c.b16 %v1306, %v1305
        %v1336 = vpack.c.b16 %v1308, %v1307
        %v1337 = vpack.c.b16 %v1310, %v1309
        %v1338 = vpack.c.b16 %v1312, %v1311
        %v1339 = vpack.c.b16 %v1314, %v1313
        %v1340 = vpack.c.b16 %v1316, %v1315
        %v1341 = vpack.c.b16 %v1318, %v1317
        %v1342 = vpack.c.b16 %v1320, %v1319
        %v1343 = vpack.c.b16 %v1322, %v1321
        %v1344 = vpack.c.b16 %v1324, %v1323
        %v1345 = vpack.c.b16 %v1326, %v1325
        %v1346 = vpack.c.b16 %v1328, %v1327
        %v1347 = vpack.c.b16 %v1330, %v1329
        %v1348 = vpack.c.b16 %v1332, %v1331
        %1365 = vmatprep.subr.bf16.mxu0 0
        %1366 = vmatpush1.bf16.msra.mxu0 %v1333
        %1367 = vmatprep.subr.bf16.mxu0 0
        %1368 = vmatpush1.bf16.msra.mxu0 %v1334
        %1369 = vmatprep.subr.bf16.mxu0 0
        %1370 = vmatpush1.bf16.msra.mxu0 %v1335
        %1371 = vmatprep.subr.bf16.mxu0 0
        %1372 = vmatpush1.bf16.msra.mxu0 %v1336
        %1373 = vmatprep.subr.bf16.mxu0 0
        %1374 = vmatpush1.bf16.msra.mxu0 %v1337
        %1375 = vmatprep.subr.bf16.mxu0 0
        %1376 = vmatpush1.bf16.msra.mxu0 %v1338
        %1377 = vmatprep.subr.bf16.mxu0 0
        %1378 = vmatpush1.bf16.msra.mxu0 %v1339
        %1379 = vmatprep.subr.bf16.mxu0 0
        %1380 = vmatpush1.bf16.msra.mxu0 %v1340
        %1381 = vmatprep.subr.bf16.mxu0 0
        %1382 = vmatpush1.bf16.msra.mxu0 %v1341
        %1383 = vmatprep.subr.bf16.mxu0 0
        %1384 = vmatpush1.bf16.msra.mxu0 %v1342
        %1385 = vmatprep.subr.bf16.mxu0 0
        %1386 = vmatpush1.bf16.msra.mxu0 %v1343
        %1387 = vmatprep.subr.bf16.mxu0 0
        %1388 = vmatpush1.bf16.msra.mxu0 %v1344
        %1389 = vmatprep.subr.bf16.mxu0 0
        %1390 = vmatpush1.bf16.msra.mxu0 %v1345
        %1391 = vmatprep.subr.bf16.mxu0 0
        %1392 = vmatpush1.bf16.msra.mxu0 %v1346
        %1393 = vmatprep.subr.bf16.mxu0 0
        %1394 = vmatpush1.bf16.msra.mxu0 %v1347
        %1395 = vmatprep.subr.bf16.mxu0 0
        %1396 = vmatpush1.bf16.msra.mxu0 %v1348
        %1397 = vmatprep.mubr.bf16.mxu0 %v1238
        %1398 = vmatmul.mubr.bf16.gmra.mrb[0].mxu0 %v1237
        %v1399 = vpop.f32.mrb[0].mxu0
        %v1400 = vadd.f32 0.0, %v1399
        %v1401 = vpop.f32.mrb[0].mxu0
        %v1402 = vpop.f32.mrb[0].mxu0
        %v1403 = vadd.f32 0.0, %v1402
        %v1404 = vpop.f32.mrb[0].mxu0
        %1405 = vmatprep.mubr.bf16.mxu0 %v1240
        %1406 = vmatmul.mubr.bf16.gmra.mrb[0].mxu0 %v1239
        %v1407 = vpop.f32.mrb[0].mxu0
        %v1408 = vadd.f32 0.0, %v1407
        %v1409 = vpop.f32.mrb[0].mxu0
        %v1410 = vpop.f32.mrb[0].mxu0
        %v1411 = vadd.f32 0.0, %v1410
        %v1412 = vpop.f32.mrb[0].mxu0
        %1413 = vmatprep.mubr.bf16.mxu0 %v1242
        %1414 = vmatmul.mubr.bf16.gmra.mrb[0].mxu0 %v1241
        %v1415 = vpop.f32.mrb[0].mxu0
        %v1416 = vadd.f32 0.0, %v1415
        %v1417 = vpop.f32.mrb[0].mxu0
        %v1418 = vpop.f32.mrb[0].mxu0
        %v1419 = vadd.f32 0.0, %v1418
        %v1420 = vpop.f32.mrb[0].mxu0
        %1421 = vmatprep.mubr.bf16.mxu0 %v1244
        %1422 = vmatmul.mubr.bf16.gmra.mrb[0].mxu0 %v1243
        %v1423 = vpop.f32.mrb[0].mxu0
        %v1424 = vadd.f32 0.0, %v1423
        %v1425 = vpop.f32.mrb[0].mxu0
        %v1426 = vpop.f32.mrb[0].mxu0
        %v1427 = vadd.f32 0.0, %v1426
        %v1428 = vpop.f32.mrb[0].mxu0
        %1429 = vmatprep.mubr.bf16.mxu0 %v1246
        %1430 = vmatmul.mubr.bf16.gmra.mrb[0].mxu0 %v1245
        %v1431 = vpop.f32.mrb[0].mxu0
        %v1432 = vadd.f32 0.0, %v1431
        %v1433 = vpop.f32.mrb[0].mxu0
        %v1434 = vpop.f32.mrb[0].mxu0
        %v1435 = vadd.f32 0.0, %v1434
        %v1436 = vpop.f32.mrb[0].mxu0
        %1437 = vmatprep.mubr.bf16.mxu0 %v1248
        %1438 = vmatmul.mubr.bf16.gmra.mrb[0].mxu0 %v1247
        %v1439 = vpop.f32.mrb[0].mxu0
        %v1440 = vadd.f32 0.0, %v1439
        %v1441 = vpop.f32.mrb[0].mxu0
        %v1442 = vpop.f32.mrb[0].mxu0
        %v1443 = vadd.f32 0.0, %v1442
        %v1444 = vpop.f32.mrb[0].mxu0
        %1445 = vmatprep.mubr.bf16.mxu0 %v1250
        %1446 = vmatmul.mubr.bf16.gmra.mrb[0].mxu0 %v1249
        %v1447 = vpop.f32.mrb[0].mxu0
        %v1448 = vadd.f32 0.0, %v1447
        %v1449 = vpop.f32.mrb[0].mxu0
        %v1450 = vpop.f32.mrb[0].mxu0
        %v1451 = vadd.f32 0.0, %v1450
        %v1452 = vpop.f32.mrb[0].mxu0
        %1453 = vmatprep.mubr.bf16.mxu0 %v1252
        %1454 = vmatmul.mubr.bf16.gmra.mrb[0].mxu0 %v1251
        %v1455 = vpop.f32.mrb[0].mxu0
        %v1456 = vadd.f32 0.0, %v1455
        %v1457 = vpop.f32.mrb[0].mxu0
        %v1458 = vpop.f32.mrb[0].mxu0
        %v1459 = vadd.f32 0.0, %v1458
        %v1460 = vpop.f32.mrb[0].mxu0
        %1461 = vdwg.mxu0
        %v1478 = vunpack.c.l.b16 %v1092
        %v1479 = vunpack.c.h.b16 %v1092
        %v1480 = vunpack.c.l.b16 %v1093
        %v1481 = vunpack.c.h.b16 %v1093
        %v1482 = vunpack.c.l.b16 %v1094
        %v1483 = vunpack.c.h.b16 %v1094
        %v1484 = vunpack.c.l.b16 %v1095
        %v1485 = vunpack.c.h.b16 %v1095
        %v1486 = vunpack.c.l.b16 %v1096
        %v1487 = vunpack.c.h.b16 %v1096
        %v1488 = vunpack.c.l.b16 %v1097
        %v1489 = vunpack.c.h.b16 %v1097
        %v1490 = vunpack.c.l.b16 %v1098
        %v1491 = vunpack.c.h.b16 %v1098
        %v1492 = vunpack.c.l.b16 %v1099
        %v1493 = vunpack.c.h.b16 %v1099
        %v1494 = vunpack.c.l.b16 %v1100
        %v1495 = vunpack.c.h.b16 %v1100
        %v1496 = vunpack.c.l.b16 %v1101
        %v1497 = vunpack.c.h.b16 %v1101
        %v1498 = vunpack.c.l.b16 %v1102
        %v1499 = vunpack.c.h.b16 %v1102
        %v1500 = vunpack.c.l.b16 %v1103
        %v1501 = vunpack.c.h.b16 %v1103
        %v1502 = vunpack.c.l.b16 %v1104
        %v1503 = vunpack.c.h.b16 %v1104
        %v1504 = vunpack.c.l.b16 %v1105
        %v1505 = vunpack.c.h.b16 %v1105
        %v1506 = vunpack.c.l.b16 %v1106
        %v1507 = vunpack.c.h.b16 %v1106
        %v1508 = vunpack.c.l.b16 %v1107
        %v1509 = vunpack.c.h.b16 %v1107
        %v1510 = vpack.c.b16 %v1480, %v1478
        %v1511 = vpack.c.b16 %v1481, %v1479
        %v1512 = vpack.c.b16 %v1484, %v1482
        %v1513 = vpack.c.b16 %v1485, %v1483
        %v1514 = vpack.c.b16 %v1488, %v1486
        %v1515 = vpack.c.b16 %v1489, %v1487
        %v1516 = vpack.c.b16 %v1492, %v1490
        %v1517 = vpack.c.b16 %v1493, %v1491
        %v1518 = vpack.c.b16 %v1496, %v1494
        %v1519 = vpack.c.b16 %v1497, %v1495
        %v1520 = vpack.c.b16 %v1500, %v1498
        %v1521 = vpack.c.b16 %v1501, %v1499
        %v1522 = vpack.c.b16 %v1504, %v1502
        %v1523 = vpack.c.b16 %v1505, %v1503
        %v1524 = vpack.c.b16 %v1508, %v1506
        %v1525 = vpack.c.b16 %v1509, %v1507
        %v1574 = vunpack.c.l.b16 %v1108
        %v1575 = vunpack.c.l.b16 %v1109
        %v1576 = vunpack.c.l.b16 %v1110
        %v1577 = vunpack.c.l.b16 %v1111
        %v1578 = vunpack.c.l.b16 %v1112
        %v1579 = vunpack.c.l.b16 %v1113
        %v1580 = vunpack.c.l.b16 %v1114
        %v1581 = vunpack.c.l.b16 %v1115
        %v1582 = vunpack.c.l.b16 %v1116
        %v1583 = vunpack.c.l.b16 %v1117
        %v1584 = vunpack.c.l.b16 %v1118
        %v1585 = vunpack.c.l.b16 %v1119
        %v1586 = vunpack.c.l.b16 %v1120
        %v1587 = vunpack.c.l.b16 %v1121
        %v1588 = vunpack.c.l.b16 %v1122
        %v1589 = vunpack.c.l.b16 %v1123
        %v1590 = vunpack.c.l.b16 %v1124
        %v1591 = vunpack.c.l.b16 %v1125
        %v1592 = vunpack.c.l.b16 %v1126
        %v1593 = vunpack.c.l.b16 %v1127
        %v1594 = vunpack.c.l.b16 %v1128
        %v1595 = vunpack.c.l.b16 %v1129
        %v1596 = vunpack.c.l.b16 %v1130
        %v1597 = vunpack.c.l.b16 %v1131
        %v1598 = vunpack.c.l.b16 %v1132
        %v1599 = vunpack.c.l.b16 %v1133
        %v1600 = vunpack.c.l.b16 %v1134
        %v1601 = vunpack.c.l.b16 %v1135
        %v1602 = vunpack.c.l.b16 %v1136
        %v1603 = vunpack.c.l.b16 %v1137
        %v1604 = vunpack.c.l.b16 %v1138
        %v1605 = vunpack.c.l.b16 %v1139
        %v1606 = vpack.c.b16 %v1575, %v1574
        %v1607 = vpack.c.b16 %v1577, %v1576
        %v1608 = vpack.c.b16 %v1579, %v1578
        %v1609 = vpack.c.b16 %v1581, %v1580
        %v1610 = vpack.c.b16 %v1583, %v1582
        %v1611 = vpack.c.b16 %v1585, %v1584
        %v1612 = vpack.c.b16 %v1587, %v1586
        %v1613 = vpack.c.b16 %v1589, %v1588
        %v1614 = vpack.c.b16 %v1591, %v1590
        %v1615 = vpack.c.b16 %v1593, %v1592
        %v1616 = vpack.c.b16 %v1595, %v1594
        %v1617 = vpack.c.b16 %v1597, %v1596
        %v1618 = vpack.c.b16 %v1599, %v1598
        %v1619 = vpack.c.b16 %v1601, %v1600
        %v1620 = vpack.c.b16 %v1603, %v1602
        %v1621 = vpack.c.b16 %v1605, %v1604
        %1638 = vmatprep.subr.bf16.mxu0 0
        %1639 = vmatpush1.bf16.msra.mxu0 %v1606
        %1640 = vmatprep.subr.bf16.mxu0 0
        %1641 = vmatpush1.bf16.msra.mxu0 %v1607
        %1642 = vmatprep.subr.bf16.mxu0 0
        %1643 = vmatpush1.bf16.msra.mxu0 %v1608
        %1644 = vmatprep.subr.bf16.mxu0 0
        %1645 = vmatpush1.bf16.msra.mxu0 %v1609
        %1646 = vmatprep.subr.bf16.mxu0 0
        %1647 = vmatpush1.bf16.msra.mxu0 %v1610
        %1648 = vmatprep.subr.bf16.mxu0 0
        %1649 = vmatpush1.bf16.msra.mxu0 %v1611
        %1650 = vmatprep.subr.bf16.mxu0 0
        %1651 = vmatpush1.bf16.msra.mxu0 %v1612
        %1652 = vmatprep.subr.bf16.mxu0 0
        %1653 = vmatpush1.bf16.msra.mxu0 %v1613
        %1654 = vmatprep.subr.bf16.mxu0 0
        %1655 = vmatpush1.bf16.msra.mxu0 %v1614
        %1656 = vmatprep.subr.bf16.mxu0 0
        %1657 = vmatpush1.bf16.msra.mxu0 %v1615
        %1658 = vmatprep.subr.bf16.mxu0 0
        %1659 = vmatpush1.bf16.msra.mxu0 %v1616
        %1660 = vmatprep.subr.bf16.mxu0 0
        %1661 = vmatpush1.bf16.msra.mxu0 %v1617
        %1662 = vmatprep.subr.bf16.mxu0 0
        %1663 = vmatpush1.bf16.msra.mxu0 %v1618
        %1664 = vmatprep.subr.bf16.mxu0 0
        %1665 = vmatpush1.bf16.msra.mxu0 %v1619
        %1666 = vmatprep.subr.bf16.mxu0 0
        %1667 = vmatpush1.bf16.msra.mxu0 %v1620
        %1668 = vmatprep.subr.bf16.mxu0 0
        %1669 = vmatpush1.bf16.msra.mxu0 %v1621
        %1670 = vmatprep.mubr.bf16.mxu0 %v1511
        %1671 = vmatmul.mubr.bf16.gmra.mrb[0].mxu0 %v1510
        %v1672 = vpop.f32.mrb[0].mxu0
        %v1673 = vadd.f32 %v1400, %v1672
        %v1674 = vpop.f32.mrb[0].mxu0
        %v1675 = vpop.f32.mrb[0].mxu0
        %v1676 = vadd.f32 %v1403, %v1675
        %v1677 = vpop.f32.mrb[0].mxu0
        %1678 = vmatprep.mubr.bf16.mxu0 %v1513
        %1679 = vmatmul.mubr.bf16.gmra.mrb[0].mxu0 %v1512
        %v1680 = vpop.f32.mrb[0].mxu0
        %v1681 = vadd.f32 %v1408, %v1680
        %v1682 = vpop.f32.mrb[0].mxu0
        %v1683 = vpop.f32.mrb[0].mxu0
        %v1684 = vadd.f32 %v1411, %v1683
        %v1685 = vpop.f32.mrb[0].mxu0
        %1686 = vmatprep.mubr.bf16.mxu0 %v1515
        %1687 = vmatmul.mubr.bf16.gmra.mrb[0].mxu0 %v1514
        %v1688 = vpop.f32.mrb[0].mxu0
        %v1689 = vadd.f32 %v1416, %v1688
        %v1690 = vpop.f32.mrb[0].mxu0
        %v1691 = vpop.f32.mrb[0].mxu0
        %v1692 = vadd.f32 %v1419, %v1691
        %v1693 = vpop.f32.mrb[0].mxu0
        %1694 = vmatprep.mubr.bf16.mxu0 %v1517
        %1695 = vmatmul.mubr.bf16.gmra.mrb[0].mxu0 %v1516
        %v1696 = vpop.f32.mrb[0].mxu0
        %v1697 = vadd.f32 %v1424, %v1696
        %v1698 = vpop.f32.mrb[0].mxu0
        %v1699 = vpop.f32.mrb[0].mxu0
        %v1700 = vadd.f32 %v1427, %v1699
        %v1701 = vpop.f32.mrb[0].mxu0
        %1702 = vmatprep.mubr.bf16.mxu0 %v1519
        %1703 = vmatmul.mubr.bf16.gmra.mrb[0].mxu0 %v1518
        %v1704 = vpop.f32.mrb[0].mxu0
        %v1705 = vadd.f32 %v1432, %v1704
        %v1706 = vpop.f32.mrb[0].mxu0
        %v1707 = vpop.f32.mrb[0].mxu0
        %v1708 = vadd.f32 %v1435, %v1707
        %v1709 = vpop.f32.mrb[0].mxu0
        %1710 = vmatprep.mubr.bf16.mxu0 %v1521
        %1711 = vmatmul.mubr.bf16.gmra.mrb[0].mxu0 %v1520
        %v1712 = vpop.f32.mrb[0].mxu0
        %v1713 = vadd.f32 %v1440, %v1712
        %v1714 = vpop.f32.mrb[0].mxu0
        %v1715 = vpop.f32.mrb[0].mxu0
        %v1716 = vadd.f32 %v1443, %v1715
        %v1717 = vpop.f32.mrb[0].mxu0
        %1718 = vmatprep.mubr.bf16.mxu0 %v1523
        %1719 = vmatmul.mubr.bf16.gmra.mrb[0].mxu0 %v1522
        %v1720 = vpop.f32.mrb[0].mxu0
        %v1721 = vadd.f32 %v1448, %v1720
        %v1722 = vpop.f32.mrb[0].mxu0
        %v1723 = vpop.f32.mrb[0].mxu0
        %v1724 = vadd.f32 %v1451, %v1723
        %v1725 = vpop.f32.mrb[0].mxu0
        %1726 = vmatprep.mubr.bf16.mxu0 %v1525
        %1727 = vmatmul.mubr.bf16.gmra.mrb[0].mxu0 %v1524
        %v1728 = vpop.f32.mrb[0].mxu0
        %v1729 = vadd.f32 %v1456, %v1728
        %v1730 = vpop.f32.mrb[0].mxu0
        %v1731 = vpop.f32.mrb[0].mxu0
        %v1732 = vadd.f32 %v1459, %v1731
        %v1733 = vpop.f32.mrb[0].mxu0
        %1734 = vdwg.mxu0
        %s1735 = scalar_lea.vmem [#allocation2], 16
        %v1736 = vld [vmem:[%s1735] sm:$0xff]
        %v1737 = vld [vmem:[%s1735 + $0x8] sm:$0xff]
        %v1738 = vld [vmem:[%s1735 + $0x10] sm:$0xff]
        %v1739 = vld [vmem:[%s1735 + $0x18] sm:$0xff]
        %v1740 = vld [vmem:[%s1735 + $0x20] sm:$0xff]
        %v1741 = vld [vmem:[%s1735 + $0x28] sm:$0xff]
        %v1742 = vld [vmem:[%s1735 + $0x30] sm:$0xff]
        %v1743 = vld [vmem:[%s1735 + $0x38] sm:$0xff]
        %v1744 = vld [vmem:[%s1735 + $0x50] sm:$0xff]
        %v1745 = vld [vmem:[%s1735 + $0x58] sm:$0xff]
        %v1746 = vld [vmem:[%s1735 + $0x60] sm:$0xff]
        %v1747 = vld [vmem:[%s1735 + $0x68] sm:$0xff]
        %v1748 = vld [vmem:[%s1735 + $0x70] sm:$0xff]
        %v1749 = vld [vmem:[%s1735 + $0x78] sm:$0xff]
        %v1750 = vld [vmem:[%s1735 + $0x80] sm:$0xff]
        %v1751 = vld [vmem:[%s1735 + $0x88] sm:$0xff]
        %s1752 = scalar_lea.vmem %s3, 256
        %v1753 = vld [vmem:[%s1752] sm:$0xf]
        %v1754 = vld [vmem:[%s1752 + $0x4] sm:$0xf]
        %v1755 = vld [vmem:[%s1752 + $0x8] sm:$0xf]
        %v1756 = vld [vmem:[%s1752 + $0xc] sm:$0xf]
        %v1757 = vld [vmem:[%s1752 + $0x10] sm:$0xf]
        %v1758 = vld [vmem:[%s1752 + $0x14] sm:$0xf]
        %v1759 = vld [vmem:[%s1752 + $0x18] sm:$0xf]
        %v1760 = vld [vmem:[%s1752 + $0x1c] sm:$0xf]
        %v1761 = vld [vmem:[%s1752 + $0x20] sm:$0xf]
        %v1762 = vld [vmem:[%s1752 + $0x24] sm:$0xf]
        %v1763 = vld [vmem:[%s1752 + $0x28] sm:$0xf]
        %v1764 = vld [vmem:[%s1752 + $0x2c] sm:$0xf]
        %v1765 = vld [vmem:[%s1752 + $0x30] sm:$0xf]
        %v1766 = vld [vmem:[%s1752 + $0x34] sm:$0xf]
        %v1767 = vld [vmem:[%s1752 + $0x38] sm:$0xf]
        %v1768 = vld [vmem:[%s1752 + $0x3c] sm:$0xf]
        %v1769 = vld [vmem:[%s1752 + $0x40] sm:$0xf]
        %v1770 = vld [vmem:[%s1752 + $0x44] sm:$0xf]
        %v1771 = vld [vmem:[%s1752 + $0x48] sm:$0xf]
        %v1772 = vld [vmem:[%s1752 + $0x4c] sm:$0xf]
        %v1773 = vld [vmem:[%s1752 + $0x50] sm:$0xf]
        %v1774 = vld [vmem:[%s1752 + $0x54] sm:$0xf]
        %v1775 = vld [vmem:[%s1752 + $0x58] sm:$0xf]
        %v1776 = vld [vmem:[%s1752 + $0x5c] sm:$0xf]
        %v1777 = vld [vmem:[%s1752 + $0x60] sm:$0xf]
        %v1778 = vld [vmem:[%s1752 + $0x64] sm:$0xf]
        %v1779 = vld [vmem:[%s1752 + $0x68] sm:$0xf]
        %v1780 = vld [vmem:[%s1752 + $0x6c] sm:$0xf]
        %v1781 = vld [vmem:[%s1752 + $0x70] sm:$0xf]
        %v1782 = vld [vmem:[%s1752 + $0x74] sm:$0xf]
        %v1783 = vld [vmem:[%s1752 + $0x78] sm:$0xf]
        %v1784 = vld [vmem:[%s1752 + $0x7c] sm:$0xf]
        %v1801 = vunpack.c.l.b16 %v1736
        %v1802 = vunpack.c.h.b16 %v1736
        %v1803 = vunpack.c.l.b16 %v1737
        %v1804 = vunpack.c.h.b16 %v1737
        %v1805 = vunpack.c.l.b16 %v1738
        %v1806 = vunpack.c.h.b16 %v1738
        %v1807 = vunpack.c.l.b16 %v1739
        %v1808 = vunpack.c.h.b16 %v1739
        %v1809 = vunpack.c.l.b16 %v1740
        %v1810 = vunpack.c.h.b16 %v1740
        %v1811 = vunpack.c.l.b16 %v1741
        %v1812 = vunpack.c.h.b16 %v1741
        %v1813 = vunpack.c.l.b16 %v1742
        %v1814 = vunpack.c.h.b16 %v1742
        %v1815 = vunpack.c.l.b16 %v1743
        %v1816 = vunpack.c.h.b16 %v1743
        %v1817 = vunpack.c.l.b16 %v1744
        %v1818 = vunpack.c.h.b16 %v1744
        %v1819 = vunpack.c.l.b16 %v1745
        %v1820 = vunpack.c.h.b16 %v1745
        %v1821 = vunpack.c.l.b16 %v1746
        %v1822 = vunpack.c.h.b16 %v1746
        %v1823 = vunpack.c.l.b16 %v1747
        %v1824 = vunpack.c.h.b16 %v1747
        %v1825 = vunpack.c.l.b16 %v1748
        %v1826 = vunpack.c.h.b16 %v1748
        %v1827 = vunpack.c.l.b16 %v1749
        %v1828 = vunpack.c.h.b16 %v1749
        %v1829 = vunpack.c.l.b16 %v1750
        %v1830 = vunpack.c.h.b16 %v1750
        %v1831 = vunpack.c.l.b16 %v1751
        %v1832 = vunpack.c.h.b16 %v1751
        %v1833 = vpack.c.b16 %v1803, %v1801
        %v1834 = vpack.c.b16 %v1804, %v1802
        %v1835 = vpack.c.b16 %v1807, %v1805
        %v1836 = vpack.c.b16 %v1808, %v1806
        %v1837 = vpack.c.b16 %v1811, %v1809
        %v1838 = vpack.c.b16 %v1812, %v1810
        %v1839 = vpack.c.b16 %v1815, %v1813
        %v1840 = vpack.c.b16 %v1816, %v1814
        %v1841 = vpack.c.b16 %v1819, %v1817
        %v1842 = vpack.c.b16 %v1820, %v1818
        %v1843 = vpack.c.b16 %v1823, %v1821
        %v1844 = vpack.c.b16 %v1824, %v1822
        %v1845 = vpack.c.b16 %v1827, %v1825
        %v1846 = vpack.c.b16 %v1828, %v1826
        %v1847 = vpack.c.b16 %v1831, %v1829
        %v1848 = vpack.c.b16 %v1832, %v1830
        %v1897 = vunpack.c.l.b16 %v1753
        %v1898 = vunpack.c.l.b16 %v1754
        %v1899 = vunpack.c.l.b16 %v1755
        %v1900 = vunpack.c.l.b16 %v1756
        %v1901 = vunpack.c.l.b16 %v1757
        %v1902 = vunpack.c.l.b16 %v1758
        %v1903 = vunpack.c.l.b16 %v1759
        %v1904 = vunpack.c.l.b16 %v1760
        %v1905 = vunpack.c.l.b16 %v1761
        %v1906 = vunpack.c.l.b16 %v1762
        %v1907 = vunpack.c.l.b16 %v1763
        %v1908 = vunpack.c.l.b16 %v1764
        %v1909 = vunpack.c.l.b16 %v1765
        %v1910 = vunpack.c.l.b16 %v1766
        %v1911 = vunpack.c.l.b16 %v1767
        %v1912 = vunpack.c.l.b16 %v1768
        %v1913 = vunpack.c.l.b16 %v1769
        %v1914 = vunpack.c.l.b16 %v1770
        %v1915 = vunpack.c.l.b16 %v1771
        %v1916 = vunpack.c.l.b16 %v1772
        %v1917 = vunpack.c.l.b16 %v1773
        %v1918 = vunpack.c.l.b16 %v1774
        %v1919 = vunpack.c.l.b16 %v1775
        %v1920 = vunpack.c.l.b16 %v1776
        %v1921 = vunpack.c.l.b16 %v1777
        %v1922 = vunpack.c.l.b16 %v1778
        %v1923 = vunpack.c.l.b16 %v1779
        %v1924 = vunpack.c.l.b16 %v1780
        %v1925 = vunpack.c.l.b16 %v1781
        %v1926 = vunpack.c.l.b16 %v1782
        %v1927 = vunpack.c.l.b16 %v1783
        %v1928 = vunpack.c.l.b16 %v1784
        %v1929 = vpack.c.b16 %v1898, %v1897
        %v1930 = vpack.c.b16 %v1900, %v1899
        %v1931 = vpack.c.b16 %v1902, %v1901
        %v1932 = vpack.c.b16 %v1904, %v1903
        %v1933 = vpack.c.b16 %v1906, %v1905
        %v1934 = vpack.c.b16 %v1908, %v1907
        %v1935 = vpack.c.b16 %v1910, %v1909
        %v1936 = vpack.c.b16 %v1912, %v1911
        %v1937 = vpack.c.b16 %v1914, %v1913
        %v1938 = vpack.c.b16 %v1916, %v1915
        %v1939 = vpack.c.b16 %v1918, %v1917
        %v1940 = vpack.c.b16 %v1920, %v1919
        %v1941 = vpack.c.b16 %v1922, %v1921
        %v1942 = vpack.c.b16 %v1924, %v1923
        %v1943 = vpack.c.b16 %v1926, %v1925
        %v1944 = vpack.c.b16 %v1928, %v1927
        %1961 = vmatprep.subr.bf16.mxu0 0
        %1962 = vmatpush1.bf16.msra.mxu0 %v1929
        %1963 = vmatprep.subr.bf16.mxu0 0
        %1964 = vmatpush1.bf16.msra.mxu0 %v1930
        %1965 = vmatprep.subr.bf16.mxu0 0
        %1966 = vmatpush1.bf16.msra.mxu0 %v1931
        %1967 = vmatprep.subr.bf16.mxu0 0
        %1968 = vmatpush1.bf16.msra.mxu0 %v1932
        %1969 = vmatprep.subr.bf16.mxu0 0
        %1970 = vmatpush1.bf16.msra.mxu0 %v1933
        %1971 = vmatprep.subr.bf16.mxu0 0
        %1972 = vmatpush1.bf16.msra.mxu0 %v1934
        %1973 = vmatprep.subr.bf16.mxu0 0
        %1974 = vmatpush1.bf16.msra.mxu0 %v1935
        %1975 = vmatprep.subr.bf16.mxu0 0
        %1976 = vmatpush1.bf16.msra.mxu0 %v1936
        %1977 = vmatprep.subr.bf16.mxu0 0
        %1978 = vmatpush1.bf16.msra.mxu0 %v1937
        %1979 = vmatprep.subr.bf16.mxu0 0
        %1980 = vmatpush1.bf16.msra.mxu0 %v1938
        %1981 = vmatprep.subr.bf16.mxu0 0
        %1982 = vmatpush1.bf16.msra.mxu0 %v1939
        %1983 = vmatprep.subr.bf16.mxu0 0
        %1984 = vmatpush1.bf16.msra.mxu0 %v1940
        %1985 = vmatprep.subr.bf16.mxu0 0
        %1986 = vmatpush1.bf16.msra.mxu0 %v1941
        %1987 = vmatprep.subr.bf16.mxu0 0
        %1988 = vmatpush1.bf16.msra.mxu0 %v1942
        %1989 = vmatprep.subr.bf16.mxu0 0
        %1990 = vmatpush1.bf16.msra.mxu0 %v1943
        %1991 = vmatprep.subr.bf16.mxu0 0
        %1992 = vmatpush1.bf16.msra.mxu0 %v1944
        %1993 = vmatprep.mubr.bf16.mxu0 %v1834
        %1994 = vmatmul.mubr.bf16.gmra.mrb[0].mxu0 %v1833
        %v1995 = vpop.f32.mrb[0].mxu0
        %v1996 = vadd.f32 0.0, %v1995
        %v1997 = vpop.f32.mrb[0].mxu0
        %v1998 = vpop.f32.mrb[0].mxu0
        %v1999 = vadd.f32 0.0, %v1998
        %v2000 = vpop.f32.mrb[0].mxu0
        %2001 = vmatprep.mubr.bf16.mxu0 %v1836
        %2002 = vmatmul.mubr.bf16.gmra.mrb[0].mxu0 %v1835
        %v2003 = vpop.f32.mrb[0].mxu0
        %v2004 = vadd.f32 0.0, %v2003
        %v2005 = vpop.f32.mrb[0].mxu0
        %v2006 = vpop.f32.mrb[0].mxu0
        %v2007 = vadd.f32 0.0, %v2006
        %v2008 = vpop.f32.mrb[0].mxu0
        %2009 = vmatprep.mubr.bf16.mxu0 %v1838
        %2010 = vmatmul.mubr.bf16.gmra.mrb[0].mxu0 %v1837
        %v2011 = vpop.f32.mrb[0].mxu0
        %v2012 = vadd.f32 0.0, %v2011
        %v2013 = vpop.f32.mrb[0].mxu0
        %v2014 = vpop.f32.mrb[0].mxu0
        %v2015 = vadd.f32 0.0, %v2014
        %v2016 = vpop.f32.mrb[0].mxu0
        %2017 = vmatprep.mubr.bf16.mxu0 %v1840
        %2018 = vmatmul.mubr.bf16.gmra.mrb[0].mxu0 %v1839
        %v2019 = vpop.f32.mrb[0].mxu0
        %v2020 = vadd.f32 0.0, %v2019
        %v2021 = vpop.f32.mrb[0].mxu0
        %v2022 = vpop.f32.mrb[0].mxu0
        %v2023 = vadd.f32 0.0, %v2022
        %v2024 = vpop.f32.mrb[0].mxu0
        %2025 = vmatprep.mubr.bf16.mxu0 %v1842
        %2026 = vmatmul.mubr.bf16.gmra.mrb[0].mxu0 %v1841
        %v2027 = vpop.f32.mrb[0].mxu0
        %v2028 = vadd.f32 0.0, %v2027
        %v2029 = vpop.f32.mrb[0].mxu0
        %v2030 = vpop.f32.mrb[0].mxu0
        %v2031 = vadd.f32 0.0, %v2030
        %v2032 = vpop.f32.mrb[0].mxu0
        %2033 = vmatprep.mubr.bf16.mxu0 %v1844
        %2034 = vmatmul.mubr.bf16.gmra.mrb[0].mxu0 %v1843
        %v2035 = vpop.f32.mrb[0].mxu0
        %v2036 = vadd.f32 0.0, %v2035
        %v2037 = vpop.f32.mrb[0].mxu0
        %v2038 = vpop.f32.mrb[0].mxu0
        %v2039 = vadd.f32 0.0, %v2038
        %v2040 = vpop.f32.mrb[0].mxu0
        %2041 = vmatprep.mubr.bf16.mxu0 %v1846
        %2042 = vmatmul.mubr.bf16.gmra.mrb[0].mxu0 %v1845
        %v2043 = vpop.f32.mrb[0].mxu0
        %v2044 = vadd.f32 0.0, %v2043
        %v2045 = vpop.f32.mrb[0].mxu0
        %v2046 = vpop.f32.mrb[0].mxu0
        %v2047 = vadd.f32 0.0, %v2046
        %v2048 = vpop.f32.mrb[0].mxu0
        %2049 = vmatprep.mubr.bf16.mxu0 %v1848
        %2050 = vmatmul.mubr.bf16.gmra.mrb[0].mxu0 %v1847
        %v2051 = vpop.f32.mrb[0].mxu0
        %v2052 = vadd.f32 0.0, %v2051
        %v2053 = vpop.f32.mrb[0].mxu0
        %v2054 = vpop.f32.mrb[0].mxu0
        %v2055 = vadd.f32 0.0, %v2054
        %v2056 = vpop.f32.mrb[0].mxu0
        %2057 = vdwg.mxu0
        %v2058 = vadd.f32 %v1673, %v1996
        %v2059 = vadd.f32 %v1676, %v1999
        %v2060 = vadd.f32 %v1681, %v2004
        %v2061 = vadd.f32 %v1684, %v2007
        %v2062 = vadd.f32 %v1689, %v2012
        %v2063 = vadd.f32 %v1692, %v2015
        %v2064 = vadd.f32 %v1697, %v2020
        %v2065 = vadd.f32 %v1700, %v2023
        %v2066 = vadd.f32 %v1705, %v2028
        %v2067 = vadd.f32 %v1708, %v2031
        %v2068 = vadd.f32 %v1713, %v2036
        %v2069 = vadd.f32 %v1716, %v2039
        %v2070 = vadd.f32 %v1721, %v2044
        %v2071 = vadd.f32 %v1724, %v2047
        %v2072 = vadd.f32 %v1729, %v2052
        %v2073 = vadd.f32 %v1732, %v2055
        %v2074 = vld [vmem:[%s4] sm:$0x1]
        %v2076 = vlaneseq
        %v2077 = vshrl.u32 %v2076, 7
        %v2078 = vsub.s32 0, %v2077
        %v2079 = vrot.slane %v2074, %v2078
        %v2081 = vadd.f32 %v2058, %v2079
        %v2082 = vadd.f32 %v2059, %v2079
        %v2083 = vadd.f32 %v2060, %v2079
        %v2084 = vadd.f32 %v2061, %v2079
        %v2085 = vadd.f32 %v2062, %v2079
        %v2086 = vadd.f32 %v2063, %v2079
        %v2087 = vadd.f32 %v2064, %v2079
        %v2088 = vadd.f32 %v2065, %v2079
        %v2089 = vadd.f32 %v2066, %v2079
        %v2090 = vadd.f32 %v2067, %v2079
        %v2091 = vadd.f32 %v2068, %v2079
        %v2092 = vadd.f32 %v2069, %v2079
        %v2093 = vadd.f32 %v2070, %v2079
        %v2094 = vadd.f32 %v2071, %v2079
        %v2095 = vadd.f32 %v2072, %v2079
        %v2096 = vadd.f32 %v2073, %v2079
        %v2097 = vmax.f32 %v2081, 0.0
        %v2098 = vmax.f32 %v2082, 0.0
        %v2099 = vmax.f32 %v2083, 0.0
        %v2100 = vmax.f32 %v2084, 0.0
        %v2101 = vmax.f32 %v2085, 0.0
        %v2102 = vmax.f32 %v2086, 0.0
        %v2103 = vmax.f32 %v2087, 0.0
        %v2104 = vmax.f32 %v2088, 0.0
        %v2105 = vmax.f32 %v2089, 0.0
        %v2106 = vmax.f32 %v2090, 0.0
        %v2107 = vmax.f32 %v2091, 0.0
        %v2108 = vmax.f32 %v2092, 0.0
        %v2109 = vmax.f32 %v2093, 0.0
        %v2110 = vmax.f32 %v2094, 0.0
        %v2111 = vmax.f32 %v2095, 0.0
        %v2112 = vmax.f32 %v2096, 0.0
        %v2113 = vpack.c.bf16 %v2098, %v2097
        %v2114 = vpack.c.bf16 %v2100, %v2099
        %v2115 = vpack.c.bf16 %v2102, %v2101
        %v2116 = vpack.c.bf16 %v2104, %v2103
        %v2117 = vpack.c.bf16 %v2106, %v2105
        %v2118 = vpack.c.bf16 %v2108, %v2107
        %v2119 = vpack.c.bf16 %v2110, %v2109
        %v2120 = vpack.c.bf16 %v2112, %v2111
        %v2121 = vld [vmem:[%s5] sm:$0xff]
        %v2122 = vld [vmem:[%s5 + $0x8] sm:$0xff]
        %v2123 = vld [vmem:[%s5 + $0x10] sm:$0xff]
        %v2124 = vld [vmem:[%s5 + $0x18] sm:$0xff]
        %v2125 = vld [vmem:[%s5 + $0x20] sm:$0xff]
        %v2126 = vld [vmem:[%s5 + $0x28] sm:$0xff]
        %v2127 = vld [vmem:[%s5 + $0x30] sm:$0xff]
        %v2128 = vld [vmem:[%s5 + $0x38] sm:$0xff]
        %v2129 = vld [vmem:[%s6] sm:$0x3]
        %v2131 = vlaneseq
        %v2132 = vshrl.u32 %v2131, 7
        %v2133 = vsub.s32 0, %v2132
        %v2134 = vrot.slane %v2129, %v2133
        %v2135 = vlaneseq
        %v2136 = vshrl.u32 %v2135, 7
        %v2137 = vsub.s32 1, %v2136
        %v2138 = vrot.slane %v2129, %v2137
        %v2149 = vunpack.c.l.b16 %v2121
        %v2150 = vunpack.c.h.b16 %v2121
        %v2151 = vunpack.c.l.b16 %v2122
        %v2152 = vunpack.c.h.b16 %v2122
        %v2153 = vunpack.c.l.b16 %v2123
        %v2154 = vunpack.c.h.b16 %v2123
        %v2155 = vunpack.c.l.b16 %v2124
        %v2156 = vunpack.c.h.b16 %v2124
        %v2157 = vunpack.c.l.b16 %v2125
        %v2158 = vunpack.c.h.b16 %v2125
        %v2159 = vunpack.c.l.b16 %v2126
        %v2160 = vunpack.c.h.b16 %v2126
        %v2161 = vunpack.c.l.b16 %v2127
        %v2162 = vunpack.c.h.b16 %v2127
        %v2163 = vunpack.c.l.b16 %v2128
        %v2164 = vunpack.c.h.b16 %v2128
        %v2165 = vpack.c.b16 %v2151, %v2149
        %v2166 = vpack.c.b16 %v2152, %v2150
        %v2167 = vpack.c.b16 %v2155, %v2153
        %v2168 = vpack.c.b16 %v2156, %v2154
        %v2169 = vpack.c.b16 %v2159, %v2157
        %v2170 = vpack.c.b16 %v2160, %v2158
        %v2171 = vpack.c.b16 %v2163, %v2161
        %v2172 = vpack.c.b16 %v2164, %v2162
        %v2182 = vsel %vm892, %v2113, 0
        %v2185 = vsel %vm892, %v2114, 0
        %v2188 = vsel %vm892, %v2115, 0
        %v2191 = vsel %vm892, %v2116, 0
        %v2194 = vsel %vm892, %v2117, 0
        %v2197 = vsel %vm892, %v2118, 0
        %v2200 = vsel %vm892, %v2119, 0
        %v2203 = vsel %vm892, %v2120, 0
        %2205 = vmatprep.subr.bf16.mxu0 %v2166
        %2206 = vmatpush1.bf16.msra.mxu0 %v2165
        %2207 = vmatprep.subr.bf16.mxu0 %v2168
        %2208 = vmatpush1.bf16.msra.mxu0 %v2167
        %2209 = vmatprep.subr.bf16.mxu0 %v2170
        %2210 = vmatpush1.bf16.msra.mxu0 %v2169
        %2211 = vmatprep.subr.bf16.mxu0 %v2172
        %2212 = vmatpush1.bf16.msra.mxu0 %v2171
        %2213 = vmatprep.subr.bf16.mxu0 0
        %2214 = vmatpush1.bf16.msra.mxu0 0
        %2215 = vmatprep.subr.bf16.mxu0 0
        %2216 = vmatpush1.bf16.msra.mxu0 0
        %2217 = vmatprep.subr.bf16.mxu0 0
        %2218 = vmatpush1.bf16.msra.mxu0 0
        %2219 = vmatprep.subr.bf16.mxu0 0
        %2220 = vmatpush1.bf16.msra.mxu0 0
        %2221 = vmatprep.subr.bf16.mxu0 0
        %2222 = vmatpush1.bf16.msra.mxu0 0
        %2223 = vmatprep.subr.bf16.mxu0 0
        %2224 = vmatpush1.bf16.msra.mxu0 0
        %2225 = vmatprep.subr.bf16.mxu0 0
        %2226 = vmatpush1.bf16.msra.mxu0 0
        %2227 = vmatprep.subr.bf16.mxu0 0
        %2228 = vmatpush1.bf16.msra.mxu0 0
        %2229 = vmatprep.subr.bf16.mxu0 0
        %2230 = vmatpush1.bf16.msra.mxu0 0
        %2231 = vmatprep.subr.bf16.mxu0 0
        %2232 = vmatpush1.bf16.msra.mxu0 0
        %2233 = vmatprep.subr.bf16.mxu0 0
        %2234 = vmatpush1.bf16.msra.mxu0 0
        %2235 = vmatprep.subr.bf16.mxu0 0
        %2236 = vmatpush1.bf16.msra.mxu0 0
        %2237 = vmatprep.mubr.bf16.mxu0 0
        %2238 = vmatmul.mubr.bf16.gmra.mrb[0].mxu0 %v2182
        %v2239 = vpop.f32.mrb[0].mxu0
        %v2240 = vadd.f32 %v2134, %v2239
        %v2241 = vpop.f32.mrb[0].mxu0
        %v2242 = vadd.f32 %v2138, %v2241
        %v2243 = vpop.f32.mrb[0].mxu0
        %v2244 = vadd.f32 %v2134, %v2243
        %v2245 = vpop.f32.mrb[0].mxu0
        %v2246 = vadd.f32 %v2138, %v2245
        %2247 = vmatprep.mubr.bf16.mxu0 0
        %2248 = vmatmul.mubr.bf16.gmra.mrb[0].mxu0 %v2185
        %v2249 = vpop.f32.mrb[0].mxu0
        %v2250 = vadd.f32 %v2134, %v2249
        %v2251 = vpop.f32.mrb[0].mxu0
        %v2252 = vadd.f32 %v2138, %v2251
        %v2253 = vpop.f32.mrb[0].mxu0
        %v2254 = vadd.f32 %v2134, %v2253
        %v2255 = vpop.f32.mrb[0].mxu0
        %v2256 = vadd.f32 %v2138, %v2255
        %2257 = vmatprep.mubr.bf16.mxu0 0
        %2258 = vmatmul.mubr.bf16.gmra.mrb[0].mxu0 %v2188
        %v2259 = vpop.f32.mrb[0].mxu0
        %v2260 = vadd.f32 %v2134, %v2259
        %v2261 = vpop.f32.mrb[0].mxu0
        %v2262 = vadd.f32 %v2138, %v2261
        %v2263 = vpop.f32.mrb[0].mxu0
        %v2264 = vadd.f32 %v2134, %v2263
        %v2265 = vpop.f32.mrb[0].mxu0
        %v2266 = vadd.f32 %v2138, %v2265
        %2267 = vmatprep.mubr.bf16.mxu0 0
        %2268 = vmatmul.mubr.bf16.gmra.mrb[0].mxu0 %v2191
        %v2269 = vpop.f32.mrb[0].mxu0
        %v2270 = vadd.f32 %v2134, %v2269
        %v2271 = vpop.f32.mrb[0].mxu0
        %v2272 = vadd.f32 %v2138, %v2271
        %v2273 = vpop.f32.mrb[0].mxu0
        %v2274 = vadd.f32 %v2134, %v2273
        %v2275 = vpop.f32.mrb[0].mxu0
        %v2276 = vadd.f32 %v2138, %v2275
        %2277 = vmatprep.mubr.bf16.mxu0 0
        %2278 = vmatmul.mubr.bf16.gmra.mrb[0].mxu0 %v2194
        %v2279 = vpop.f32.mrb[0].mxu0
        %v2280 = vadd.f32 %v2134, %v2279
        %v2281 = vpop.f32.mrb[0].mxu0
        %v2282 = vadd.f32 %v2138, %v2281
        %v2283 = vpop.f32.mrb[0].mxu0
        %v2284 = vadd.f32 %v2134, %v2283
        %v2285 = vpop.f32.mrb[0].mxu0
        %v2286 = vadd.f32 %v2138, %v2285
        %2287 = vmatprep.mubr.bf16.mxu0 0
        %2288 = vmatmul.mubr.bf16.gmra.mrb[0].mxu0 %v2197
        %v2289 = vpop.f32.mrb[0].mxu0
        %v2290 = vadd.f32 %v2134, %v2289
        %v2291 = vpop.f32.mrb[0].mxu0
        %v2292 = vadd.f32 %v2138, %v2291
        %v2293 = vpop.f32.mrb[0].mxu0
        %v2294 = vadd.f32 %v2134, %v2293
        %v2295 = vpop.f32.mrb[0].mxu0
        %v2296 = vadd.f32 %v2138, %v2295
        %2297 = vmatprep.mubr.bf16.mxu0 0
        %2298 = vmatmul.mubr.bf16.gmra.mrb[0].mxu0 %v2200
        %v2299 = vpop.f32.mrb[0].mxu0
        %v2300 = vadd.f32 %v2134, %v2299
        %v2301 = vpop.f32.mrb[0].mxu0
        %v2302 = vadd.f32 %v2138, %v2301
        %v2303 = vpop.f32.mrb[0].mxu0
        %v2304 = vadd.f32 %v2134, %v2303
        %v2305 = vpop.f32.mrb[0].mxu0
        %v2306 = vadd.f32 %v2138, %v2305
        %2307 = vmatprep.mubr.bf16.mxu0 0
        %2308 = vmatmul.mubr.bf16.gmra.mrb[0].mxu0 %v2203
        %v2309 = vpop.f32.mrb[0].mxu0
        %v2310 = vadd.f32 %v2134, %v2309
        %v2311 = vpop.f32.mrb[0].mxu0
        %v2312 = vadd.f32 %v2138, %v2311
        %v2313 = vpop.f32.mrb[0].mxu0
        %v2314 = vadd.f32 %v2134, %v2313
        %v2315 = vpop.f32.mrb[0].mxu0
        %v2316 = vadd.f32 %v2138, %v2315
        %2317 = vdwg.mxu0
        %v2318 = vadd.f32 %v2240, %v2244
        %v2319 = vadd.f32 %v2318, %v2250
        %v2320 = vadd.f32 %v2319, %v2254
        %v2321 = vadd.f32 %v2320, %v2260
        %v2322 = vadd.f32 %v2321, %v2264
        %v2323 = vadd.f32 %v2322, %v2270
        %v2324 = vadd.f32 %v2323, %v2274
        %v2325 = vrot.slane %v2324, 4
        %v2326 = vadd.f32 %v2324, %v2325
        %v2327 = vrot.slane %v2326, 2
        %v2328 = vadd.f32 %v2326, %v2327
        %v2329 = vrot.slane %v2328, 1
        %v2330 = vadd.f32 %v2328, %v2329
        %v2331 = vadd.f32 %v2242, %v2246
        %v2332 = vadd.f32 %v2331, %v2252
        %v2333 = vadd.f32 %v2332, %v2256
        %v2334 = vadd.f32 %v2333, %v2262
        %v2335 = vadd.f32 %v2334, %v2266
        %v2336 = vadd.f32 %v2335, %v2272
        %v2337 = vadd.f32 %v2336, %v2276
        %v2338 = vrot.slane %v2337, 4
        %v2339 = vadd.f32 %v2337, %v2338
        %v2340 = vrot.slane %v2339, 2
        %v2341 = vadd.f32 %v2339, %v2340
        %v2342 = vrot.slane %v2341, 1
        %v2343 = vadd.f32 %v2341, %v2342
        %v2344 = vadd.f32 %v2280, %v2284
        %v2345 = vadd.f32 %v2344, %v2290
        %v2346 = vadd.f32 %v2345, %v2294
        %v2347 = vadd.f32 %v2346, %v2300
        %v2348 = vadd.f32 %v2347, %v2304
        %v2349 = vadd.f32 %v2348, %v2310
        %v2350 = vadd.f32 %v2349, %v2314
        %v2351 = vrot.slane %v2350, 4
        %v2352 = vadd.f32 %v2350, %v2351
        %v2353 = vrot.slane %v2352, 2
        %v2354 = vadd.f32 %v2352, %v2353
        %v2355 = vrot.slane %v2354, 1
        %v2356 = vadd.f32 %v2354, %v2355
        %v2357 = vadd.f32 %v2282, %v2286
        %v2358 = vadd.f32 %v2357, %v2292
        %v2359 = vadd.f32 %v2358, %v2296
        %v2360 = vadd.f32 %v2359, %v2302
        %v2361 = vadd.f32 %v2360, %v2306
        %v2362 = vadd.f32 %v2361, %v2312
        %v2363 = vadd.f32 %v2362, %v2316
        %v2364 = vrot.slane %v2363, 4
        %v2365 = vadd.f32 %v2363, %v2364
        %v2366 = vrot.slane %v2365, 2
        %v2367 = vadd.f32 %v2365, %v2366
        %v2368 = vrot.slane %v2367, 1
        %v2369 = vadd.f32 %v2367, %v2368
        %v2370 = vrcp.pop 64.0
        %v2371 = vmul.f32 %v2330, %v2370
        %v2372 = vmul.f32 %v2343, %v2370
        %v2373 = vmul.f32 %v2356, %v2370
        %v2374 = vmul.f32 %v2369, %v2370
        %v2375 = vld [vmem:[%s7] sm:$0xff]
        %v2376 = vld [vmem:[%s7 + $0x8] sm:$0xff]
        %v2377 = vld [vmem:[%s7 + $0x10] sm:$0xff]
        %v2378 = vld [vmem:[%s7 + $0x18] sm:$0xff]
        %v2379 = vld [vmem:[%s7 + $0x20] sm:$0xff]
        %v2380 = vld [vmem:[%s7 + $0x28] sm:$0xff]
        %v2381 = vld [vmem:[%s7 + $0x30] sm:$0xff]
        %v2382 = vld [vmem:[%s7 + $0x38] sm:$0xff]
        %v2383 = vld [vmem:[%s7 + $0x40] sm:$0xff]
        %v2384 = vld [vmem:[%s7 + $0x48] sm:$0xff]
        %v2385 = vld [vmem:[%s7 + $0x50] sm:$0xff]
        %v2386 = vld [vmem:[%s7 + $0x58] sm:$0xff]
        %v2387 = vld [vmem:[%s7 + $0x60] sm:$0xff]
        %v2388 = vld [vmem:[%s7 + $0x68] sm:$0xff]
        %v2389 = vld [vmem:[%s7 + $0x70] sm:$0xff]
        %v2390 = vld [vmem:[%s7 + $0x78] sm:$0xff]
        %v2391 = vld [vmem:[%s7 + $0x80] sm:$0xff]
        %v2392 = vld [vmem:[%s7 + $0x88] sm:$0xff]
        %v2393 = vld [vmem:[%s7 + $0x90] sm:$0xff]
        %v2394 = vld [vmem:[%s7 + $0x98] sm:$0xff]
        %v2395 = vld [vmem:[%s7 + $0xa0] sm:$0xff]
        %v2396 = vld [vmem:[%s7 + $0xa8] sm:$0xff]
        %v2397 = vld [vmem:[%s7 + $0xb0] sm:$0xff]
        %v2398 = vld [vmem:[%s7 + $0xb8] sm:$0xff]
        %v2399 = vld [vmem:[%s7 + $0xc0] sm:$0xff]
        %v2400 = vld [vmem:[%s7 + $0xc8] sm:$0xff]
        %v2401 = vld [vmem:[%s7 + $0xd0] sm:$0xff]
        %v2402 = vld [vmem:[%s7 + $0xd8] sm:$0xff]
        %v2403 = vld [vmem:[%s7 + $0xe0] sm:$0xff]
        %v2404 = vld [vmem:[%s7 + $0xe8] sm:$0xff]
        %v2405 = vld [vmem:[%s7 + $0xf0] sm:$0xff]
        %v2406 = vld [vmem:[%s7 + $0xf8] sm:$0xff]
        %vm2411 = vcmask 1041409
        %v2412 = vsel %vm2411, %v2373, %v2371
        %v2413 = vsel %vm2411, %v2374, %v2372
        %2416 = vmatprep.subr.mxu0 0.0
        %2417 = vmatpush1.msra.mxu0 %v2375
        %2418 = vmatprep.subr.mxu0 0.0
        %2419 = vmatpush1.msra.mxu0 %v2376
        %2420 = vmatprep.subr.mxu0 0.0
        %2421 = vmatpush1.msra.mxu0 %v2377
        %2422 = vmatprep.subr.mxu0 0.0
        %2423 = vmatpush1.msra.mxu0 %v2378
        %2424 = vmatprep.subr.mxu0 0.0
        %2425 = vmatpush1.msra.mxu0 %v2379
        %2426 = vmatprep.subr.mxu0 0.0
        %2427 = vmatpush1.msra.mxu0 %v2380
        %2428 = vmatprep.subr.mxu0 0.0
        %2429 = vmatpush1.msra.mxu0 %v2381
        %2430 = vmatprep.subr.mxu0 0.0
        %2431 = vmatpush1.msra.mxu0 %v2382
        %2432 = vmatprep.subr.mxu0 0.0
        %2433 = vmatpush1.msra.mxu0 %v2383
        %2434 = vmatprep.subr.mxu0 0.0
        %2435 = vmatpush1.msra.mxu0 %v2384
        %2436 = vmatprep.subr.mxu0 0.0
        %2437 = vmatpush1.msra.mxu0 %v2385
        %2438 = vmatprep.subr.mxu0 0.0
        %2439 = vmatpush1.msra.mxu0 %v2386
        %2440 = vmatprep.subr.mxu0 0.0
        %2441 = vmatpush1.msra.mxu0 %v2387
        %2442 = vmatprep.subr.mxu0 0.0
        %2443 = vmatpush1.msra.mxu0 %v2388
        %2444 = vmatprep.subr.mxu0 0.0
        %2445 = vmatpush1.msra.mxu0 %v2389
        %2446 = vmatprep.subr.mxu0 0.0
        %2447 = vmatpush1.msra.mxu0 %v2390
        %2448 = vmatprep.subr.mxu0 0.0
        %2449 = vmatpush1.msra.mxu0 %v2391
        %2450 = vmatprep.subr.mxu0 0.0
        %2451 = vmatpush1.msra.mxu0 %v2392
        %2452 = vmatprep.subr.mxu0 0.0
        %2453 = vmatpush1.msra.mxu0 %v2393
        %2454 = vmatprep.subr.mxu0 0.0
        %2455 = vmatpush1.msra.mxu0 %v2394
        %2456 = vmatprep.subr.mxu0 0.0
        %2457 = vmatpush1.msra.mxu0 %v2395
        %2458 = vmatprep.subr.mxu0 0.0
        %2459 = vmatpush1.msra.mxu0 %v2396
        %2460 = vmatprep.subr.mxu0 0.0
        %2461 = vmatpush1.msra.mxu0 %v2397
        %2462 = vmatprep.subr.mxu0 0.0
        %2463 = vmatpush1.msra.mxu0 %v2398
        %2464 = vmatprep.subr.mxu0 0.0
        %2465 = vmatpush1.msra.mxu0 %v2399
        %2466 = vmatprep.subr.mxu0 0.0
        %2467 = vmatpush1.msra.mxu0 %v2400
        %2468 = vmatprep.subr.mxu0 0.0
        %2469 = vmatpush1.msra.mxu0 %v2401
        %2470 = vmatprep.subr.mxu0 0.0
        %2471 = vmatpush1.msra.mxu0 %v2402
        %2472 = vmatprep.subr.mxu0 0.0
        %2473 = vmatpush1.msra.mxu0 %v2403
        %2474 = vmatprep.subr.mxu0 0.0
        %2475 = vmatpush1.msra.mxu0 %v2404
        %2476 = vmatprep.subr.mxu0 0.0
        %2477 = vmatpush1.msra.mxu0 %v2405
        %2478 = vmatprep.subr.mxu0 0.0
        %2479 = vmatpush1.msra.mxu0 %v2406
        %2480 = vmatprep.mubr.f32.mxu0 %v2413
        %2481 = vmatmul.mubr.f32.gmra.mrb[0].mxu0 %v2412
        %v2482 = vpop.f32.mrb[0].mxu0
        %v2483 = vadd.f32 0.0, %v2482
        %v2484 = vpop.f32.mrb[0].mxu0
        %2485 = vdwg.mxu0
        %v2486 = vmax.f32 %v2483, 0.0
        %v2487 = vld [vmem:[%s8] sm:$0xff]
        %v2488 = vld [vmem:[%s8 + $0x8] sm:$0xff]
        %v2489 = vld [vmem:[%s8 + $0x10] sm:$0xff]
        %v2490 = vld [vmem:[%s8 + $0x18] sm:$0xff]
        %vm2491 = vcmask 130048
        %v2493 = vsel %vm2491, %v2486, 0
        %2495 = vmatprep.subr.mxu0 %v2488
        %2496 = vmatpush1.msra.mxu0 %v2487
        %2497 = vmatprep.subr.mxu0 %v2490
        %2498 = vmatpush1.msra.mxu0 %v2489
        %2499 = vmatprep.subr.mxu0 0.0
        %2500 = vmatpush1.msra.mxu0 0.0
        %2501 = vmatprep.subr.mxu0 0.0
        %2502 = vmatpush1.msra.mxu0 0.0
        %2503 = vmatprep.subr.mxu0 0.0
        %2504 = vmatpush1.msra.mxu0 0.0
        %2505 = vmatprep.subr.mxu0 0.0
        %2506 = vmatpush1.msra.mxu0 0.0
        %2507 = vmatprep.subr.mxu0 0.0
        %2508 = vmatpush1.msra.mxu0 0.0
        %2509 = vmatprep.subr.mxu0 0.0
        %2510 = vmatpush1.msra.mxu0 0.0
        %2511 = vmatprep.subr.mxu0 0.0
        %2512 = vmatpush1.msra.mxu0 0.0
        %2513 = vmatprep.subr.mxu0 0.0
        %2514 = vmatpush1.msra.mxu0 0.0
        %2515 = vmatprep.subr.mxu0 0.0
        %2516 = vmatpush1.msra.mxu0 0.0
        %2517 = vmatprep.subr.mxu0 0.0
        %2518 = vmatpush1.msra.mxu0 0.0
        %2519 = vmatprep.subr.mxu0 0.0
        %2520 = vmatpush1.msra.mxu0 0.0
        %2521 = vmatprep.subr.mxu0 0.0
        %2522 = vmatpush1.msra.mxu0 0.0
        %2523 = vmatprep.subr.mxu0 0.0
        %2524 = vmatpush1.msra.mxu0 0.0
        %2525 = vmatprep.subr.mxu0 0.0
        %2526 = vmatpush1.msra.mxu0 0.0
        %2527 = vmatprep.subr.mxu0 0.0
        %2528 = vmatpush1.msra.mxu0 0.0
        %2529 = vmatprep.subr.mxu0 0.0
        %2530 = vmatpush1.msra.mxu0 0.0
        %2531 = vmatprep.subr.mxu0 0.0
        %2532 = vmatpush1.msra.mxu0 0.0
        %2533 = vmatprep.subr.mxu0 0.0
        %2534 = vmatpush1.msra.mxu0 0.0
        %2535 = vmatprep.subr.mxu0 0.0
        %2536 = vmatpush1.msra.mxu0 0.0
        %2537 = vmatprep.subr.mxu0 0.0
        %2538 = vmatpush1.msra.mxu0 0.0
        %2539 = vmatprep.subr.mxu0 0.0
        %2540 = vmatpush1.msra.mxu0 0.0
        %2541 = vmatprep.subr.mxu0 0.0
        %2542 = vmatpush1.msra.mxu0 0.0
        %2543 = vmatprep.subr.mxu0 0.0
        %2544 = vmatpush1.msra.mxu0 0.0
        %2545 = vmatprep.subr.mxu0 0.0
        %2546 = vmatpush1.msra.mxu0 0.0
        %2547 = vmatprep.subr.mxu0 0.0
        %2548 = vmatpush1.msra.mxu0 0.0
        %2549 = vmatprep.subr.mxu0 0.0
        %2550 = vmatpush1.msra.mxu0 0.0
        %2551 = vmatprep.subr.mxu0 0.0
        %2552 = vmatpush1.msra.mxu0 0.0
        %2553 = vmatprep.subr.mxu0 0.0
        %2554 = vmatpush1.msra.mxu0 0.0
        %2555 = vmatprep.subr.mxu0 0.0
        %2556 = vmatpush1.msra.mxu0 0.0
        %2557 = vmatprep.subr.mxu0 0.0
        %2558 = vmatpush1.msra.mxu0 0.0
        %2559 = vmatprep.mubr.f32.mxu0 0.0
        %2560 = vmatmul.mubr.f32.gmra.mrb[0].mxu0 %v2493
        %v2561 = vpop.f32.mrb[0].mxu0
        %v2562 = vadd.f32 0.0, %v2561
        %v2563 = vpop.f32.mrb[0].mxu0
        %v2564 = vadd.f32 0.0, %v2563
        %2565 = vdwg.mxu0
        %v2566 = vxor.u32 %v2562, 2147483648
        %v2567 = vxor.u32 %v2564, 2147483648
        %v2568 = vmul.f32 %v2566, 1.442695
        %v2569 = vpow.pop %v2568
        %v2570 = vmul.f32 %v2567, 1.442695
        %v2571 = vpow.pop %v2570
        %v2572 = vadd.f32 %v2569, 1.0
        %v2573 = vadd.f32 %v2571, 1.0
        %v2574 = vrcp.pop %v2572
        %v2575 = vmul.f32 1.0, %v2574
        %v2576 = vrcp.pop %v2573
        %v2577 = vmul.f32 1.0, %v2576
        %v2580 = vcombine.low %v2575, %v2577
        %v2582 = vunpack.c.l.s4 1966171168
        %v2583 = vunpack.c.0.s8 %v2582
        %v2584 = vlaneseq
        %v2585 = vshrl.u32 %v2584, 7
        %v2586 = vsub.s32 %v2583, %v2585
        %v2587 = vrot.slane %v2580, %v2586
        %v2588 = vcombine.high %v2587, %v2587
        %v2590 = vunpack.c.l.s4 1966171168
        %v2591 = vunpack.c.0.s8 %v2590
        %v2592 = vlaneseq
        %v2593 = vshrl.u32 %v2592, 7
        %v2594 = vsub.s32 %v2591, %v2593
        %v2595 = vrot.slane %v2587, %v2594
        %v2597 = vunpack.c.l.s4 1966171168
        %v2598 = vunpack.c.0.s8 %v2597
        %v2599 = vlaneseq
        %v2600 = vshrl.u32 %v2599, 7
        %v2601 = vsub.s32 %v2598, %v2600
        %v2602 = vrot.slane %v2588, %v2601
        %v2603 = vlaneseq
        %v2604 = vshrl.u32 %v2603, 7
        %v2605 = vsub.s32 0, %v2604
        %v2606 = vrot.slane %v2595, %v2605
        %v2607 = vlaneseq
        %v2608 = vshrl.u32 %v2607, 7
        %v2609 = vsub.s32 1, %v2608
        %v2610 = vrot.slane %v2595, %v2609
        %v2611 = vlaneseq
        %v2612 = vshrl.u32 %v2611, 7
        %v2613 = vsub.s32 0, %v2612
        %v2614 = vrot.slane %v2602, %v2613
        %v2615 = vlaneseq
        %v2616 = vshrl.u32 %v2615, 7
        %v2617 = vsub.s32 1, %v2616
        %v2618 = vrot.slane %v2602, %v2617
        %v2623 = vmul.f32 %v2240, %v2606
        %v2624 = vmul.f32 %v2242, %v2610
        %v2625 = vmul.f32 %v2244, %v2606
        %v2626 = vmul.f32 %v2246, %v2610
        %v2627 = vmul.f32 %v2250, %v2606
        %v2628 = vmul.f32 %v2252, %v2610
        %v2629 = vmul.f32 %v2254, %v2606
        %v2630 = vmul.f32 %v2256, %v2610
        %v2631 = vmul.f32 %v2260, %v2606
        %v2632 = vmul.f32 %v2262, %v2610
        %v2633 = vmul.f32 %v2264, %v2606
        %v2634 = vmul.f32 %v2266, %v2610
        %v2635 = vmul.f32 %v2270, %v2606
        %v2636 = vmul.f32 %v2272, %v2610
        %v2637 = vmul.f32 %v2274, %v2606
        %v2638 = vmul.f32 %v2276, %v2610
        %v2639 = vmul.f32 %v2280, %v2614
        %v2640 = vmul.f32 %v2282, %v2618
        %v2641 = vmul.f32 %v2284, %v2614
        %v2642 = vmul.f32 %v2286, %v2618
        %v2643 = vmul.f32 %v2290, %v2614
        %v2644 = vmul.f32 %v2292, %v2618
        %v2645 = vmul.f32 %v2294, %v2614
        %v2646 = vmul.f32 %v2296, %v2618
        %v2647 = vmul.f32 %v2300, %v2614
        %v2648 = vmul.f32 %v2302, %v2618
        %v2649 = vmul.f32 %v2304, %v2614
        %v2650 = vmul.f32 %v2306, %v2618
        %v2651 = vmul.f32 %v2310, %v2614
        %v2652 = vmul.f32 %v2312, %v2618
        %v2653 = vmul.f32 %v2314, %v2614
        %v2654 = vmul.f32 %v2316, %v2618
        %v2655 = vld [vmem:[%s334] sm:$0xff]
        %v2656 = vld [vmem:[%s334 + $0x8] sm:$0xff]
        %v2657 = vld [vmem:[%s334 + $0x10] sm:$0xff]
        %v2658 = vld [vmem:[%s334 + $0x18] sm:$0xff]
        %v2659 = vld [vmem:[%s334 + $0x20] sm:$0xff]
        %v2660 = vld [vmem:[%s334 + $0x28] sm:$0xff]
        %v2661 = vld [vmem:[%s334 + $0x30] sm:$0xff]
        %v2662 = vld [vmem:[%s334 + $0x38] sm:$0xff]
        %v2663 = vld [vmem:[%s334 + $0x40] sm:$0xff]
        %v2664 = vld [vmem:[%s334 + $0x48] sm:$0xff]
        %v2665 = vld [vmem:[%s334 + $0x50] sm:$0xff]
        %v2666 = vld [vmem:[%s334 + $0x58] sm:$0xff]
        %v2667 = vld [vmem:[%s334 + $0x60] sm:$0xff]
        %v2668 = vld [vmem:[%s334 + $0x68] sm:$0xff]
        %v2669 = vld [vmem:[%s334 + $0x70] sm:$0xff]
        %v2670 = vld [vmem:[%s334 + $0x78] sm:$0xff]
        %v2671 = vunpack.c.l.bf16 %v2655
        %v2672 = vunpack.c.h.bf16 %v2655
        %v2673 = vunpack.c.l.bf16 %v2656
        %v2674 = vunpack.c.h.bf16 %v2656
        %v2675 = vunpack.c.l.bf16 %v2657
        %v2676 = vunpack.c.h.bf16 %v2657
        %v2677 = vunpack.c.l.bf16 %v2658
        %v2678 = vunpack.c.h.bf16 %v2658
        %v2679 = vunpack.c.l.bf16 %v2659
        %v2680 = vunpack.c.h.bf16 %v2659
        %v2681 = vunpack.c.l.bf16 %v2660
        %v2682 = vunpack.c.h.bf16 %v2660
        %v2683 = vunpack.c.l.bf16 %v2661
        %v2684 = vunpack.c.h.bf16 %v2661
        %v2685 = vunpack.c.l.bf16 %v2662
        %v2686 = vunpack.c.h.bf16 %v2662
        %v2687 = vunpack.c.l.bf16 %v2663
        %v2688 = vunpack.c.h.bf16 %v2663
        %v2689 = vunpack.c.l.bf16 %v2664
        %v2690 = vunpack.c.h.bf16 %v2664
        %v2691 = vunpack.c.l.bf16 %v2665
        %v2692 = vunpack.c.h.bf16 %v2665
        %v2693 = vunpack.c.l.bf16 %v2666
        %v2694 = vunpack.c.h.bf16 %v2666
        %v2695 = vunpack.c.l.bf16 %v2667
        %v2696 = vunpack.c.h.bf16 %v2667
        %v2697 = vunpack.c.l.bf16 %v2668
        %v2698 = vunpack.c.h.bf16 %v2668
        %v2699 = vunpack.c.l.bf16 %v2669
        %v2700 = vunpack.c.h.bf16 %v2669
        %v2701 = vunpack.c.l.bf16 %v2670
        %v2702 = vunpack.c.h.bf16 %v2670
        %v2703 = vadd.f32 %v2623, %v2671
        %v2704 = vadd.f32 %v2624, %v2672
        %v2705 = vadd.f32 %v2625, %v2673
        %v2706 = vadd.f32 %v2626, %v2674
        %v2707 = vadd.f32 %v2627, %v2675
        %v2708 = vadd.f32 %v2628, %v2676
        %v2709 = vadd.f32 %v2629, %v2677
        %v2710 = vadd.f32 %v2630, %v2678
        %v2711 = vadd.f32 %v2631, %v2679
        %v2712 = vadd.f32 %v2632, %v2680
        %v2713 = vadd.f32 %v2633, %v2681
        %v2714 = vadd.f32 %v2634, %v2682
        %v2715 = vadd.f32 %v2635, %v2683
        %v2716 = vadd.f32 %v2636, %v2684
        %v2717 = vadd.f32 %v2637, %v2685
        %v2718 = vadd.f32 %v2638, %v2686
        %v2719 = vadd.f32 %v2639, %v2687
        %v2720 = vadd.f32 %v2640, %v2688
        %v2721 = vadd.f32 %v2641, %v2689
        %v2722 = vadd.f32 %v2642, %v2690
        %v2723 = vadd.f32 %v2643, %v2691
        %v2724 = vadd.f32 %v2644, %v2692
        %v2725 = vadd.f32 %v2645, %v2693
        %v2726 = vadd.f32 %v2646, %v2694
        %v2727 = vadd.f32 %v2647, %v2695
        %v2728 = vadd.f32 %v2648, %v2696
        %v2729 = vadd.f32 %v2649, %v2697
        %v2730 = vadd.f32 %v2650, %v2698
        %v2731 = vadd.f32 %v2651, %v2699
        %v2732 = vadd.f32 %v2652, %v2700
        %v2733 = vadd.f32 %v2653, %v2701
        %v2734 = vadd.f32 %v2654, %v2702
        %v2735 = vmax.f32 %v2703, 0.0
        %v2736 = vmax.f32 %v2704, 0.0
        %v2737 = vmax.f32 %v2705, 0.0
        %v2738 = vmax.f32 %v2706, 0.0
        %v2739 = vmax.f32 %v2707, 0.0
        %v2740 = vmax.f32 %v2708, 0.0
        %v2741 = vmax.f32 %v2709, 0.0
        %v2742 = vmax.f32 %v2710, 0.0
        %v2743 = vmax.f32 %v2711, 0.0
        %v2744 = vmax.f32 %v2712, 0.0
        %v2745 = vmax.f32 %v2713, 0.0
        %v2746 = vmax.f32 %v2714, 0.0
        %v2747 = vmax.f32 %v2715, 0.0
        %v2748 = vmax.f32 %v2716, 0.0
        %v2749 = vmax.f32 %v2717, 0.0
        %v2750 = vmax.f32 %v2718, 0.0
        %v2751 = vmax.f32 %v2719, 0.0
        %v2752 = vmax.f32 %v2720, 0.0
        %v2753 = vmax.f32 %v2721, 0.0
        %v2754 = vmax.f32 %v2722, 0.0
        %v2755 = vmax.f32 %v2723, 0.0
        %v2756 = vmax.f32 %v2724, 0.0
        %v2757 = vmax.f32 %v2725, 0.0
        %v2758 = vmax.f32 %v2726, 0.0
        %v2759 = vmax.f32 %v2727, 0.0
        %v2760 = vmax.f32 %v2728, 0.0
        %v2761 = vmax.f32 %v2729, 0.0
        %v2762 = vmax.f32 %v2730, 0.0
        %v2763 = vmax.f32 %v2731, 0.0
        %v2764 = vmax.f32 %v2732, 0.0
        %v2765 = vmax.f32 %v2733, 0.0
        %v2766 = vmax.f32 %v2734, 0.0
        %2767 = vst [vmem:[%s328] sm:$0xff] %v2735
        %2768 = vst [vmem:[%s328 + $0x8] sm:$0xff] %v2736
        %2769 = vst [vmem:[%s328 + $0x10] sm:$0xff] %v2737
        %2770 = vst [vmem:[%s328 + $0x18] sm:$0xff] %v2738
        %2771 = vst [vmem:[%s328 + $0x20] sm:$0xff] %v2739
        %2772 = vst [vmem:[%s328 + $0x28] sm:$0xff] %v2740
        %2773 = vst [vmem:[%s328 + $0x30] sm:$0xff] %v2741
        %2774 = vst [vmem:[%s328 + $0x38] sm:$0xff] %v2742
        %2775 = vst [vmem:[%s328 + $0x40] sm:$0xff] %v2743
        %2776 = vst [vmem:[%s328 + $0x48] sm:$0xff] %v2744
        %2777 = vst [vmem:[%s328 + $0x50] sm:$0xff] %v2745
        %2778 = vst [vmem:[%s328 + $0x58] sm:$0xff] %v2746
        %2779 = vst [vmem:[%s328 + $0x60] sm:$0xff] %v2747
        %2780 = vst [vmem:[%s328 + $0x68] sm:$0xff] %v2748
        %2781 = vst [vmem:[%s328 + $0x70] sm:$0xff] %v2749
        %2782 = vst [vmem:[%s328 + $0x78] sm:$0xff] %v2750
        %2783 = vst [vmem:[%s328 + $0x80] sm:$0xff] %v2751
        %2784 = vst [vmem:[%s328 + $0x88] sm:$0xff] %v2752
        %2785 = vst [vmem:[%s328 + $0x90] sm:$0xff] %v2753
        %2786 = vst [vmem:[%s328 + $0x98] sm:$0xff] %v2754
        %2787 = vst [vmem:[%s328 + $0xa0] sm:$0xff] %v2755
        %2788 = vst [vmem:[%s328 + $0xa8] sm:$0xff] %v2756
        %2789 = vst [vmem:[%s328 + $0xb0] sm:$0xff] %v2757
        %2790 = vst [vmem:[%s328 + $0xb8] sm:$0xff] %v2758
        %2791 = vst [vmem:[%s328 + $0xc0] sm:$0xff] %v2759
        %2792 = vst [vmem:[%s328 + $0xc8] sm:$0xff] %v2760
        %2793 = vst [vmem:[%s328 + $0xd0] sm:$0xff] %v2761
        %2794 = vst [vmem:[%s328 + $0xd8] sm:$0xff] %v2762
        %2795 = vst [vmem:[%s328 + $0xe0] sm:$0xff] %v2763
        %2796 = vst [vmem:[%s328 + $0xe8] sm:$0xff] %v2764
        %2797 = vst [vmem:[%s328 + $0xf0] sm:$0xff] %v2765
        %2798 = vst [vmem:[%s328 + $0xf8] sm:$0xff] %v2766
        %s2799 = sand.u32 %s225, 1
        %s2800 = scalar_lea.sflag [#allocation4], %s2799
        %s2801 = sand.u32 %s225, 1
        %s2802 = smul.addr %s2801, 256
        %s2803 = scalar_lea.vmem [#allocation3], %s2802
        // Predicated region
        $region57: #{tpu_custom_call.1} parent=55 // pred_check
          %p2804 = pneg %p235
        $region58: #{tpu_custom_call.1} parent=55 // pred_check_branch
          %2806 = sbr.rel (%p2804) target = $region60
        $region59: #{tpu_custom_call.1} parent=55 // pred_region
          %s2807 = smul.u32 2, %s23
          %s2809 = ssub.s32 4096, 4096
          %2810 = vsyncadd %s2800, %s2809
          %s2811 = smul.addr %s2807, 16
          %s2812 = smul.addr %s2811, 128
          %s2813 = scalar_lea.hbm %s9, %s2812
          %s2814 = sshll.u32 %s2803, 4
          %s2815 = int_to_ptr.vmem [resolvable:$true] %s2814
          %2820 = dma.vmem_to_hbm [thread:$0]  %s2815, 4096, %s2813, %s2800, 256, 256, 16
        $region60: #{tpu_custom_call.1} parent=55 // pred_fallthru
          _
      $region56: #{tpu_custom_call.1} parent=5 // pred_fallthru
        _
      %p2821 = scmp.le.s32.totalorder 2, %s18
      // Predicated region
      $region61: #{tpu_custom_call.1} parent=5 // pred_check
        %p2822 = pneg %p2821
      $region62: #{tpu_custom_call.1} parent=5 // pred_check_branch
        %2824 = sbr.rel (%p2822) target = $region64
      $region63: #{tpu_custom_call.1} parent=5 // pred_region
        %s2825 = ssub.s32 %s18, 2
        // Predicated region
        $region65: #{tpu_custom_call.1} parent=63 // pred_check
          %p2826 = pneg %p241
        $region66: #{tpu_custom_call.1} parent=63 // pred_check_branch
          %2828 = sbr.rel (%p2826) target = $region68
        $region67: #{tpu_custom_call.1} parent=63 // pred_region
          %s2829 = sand.u32 %s226, 1
          %s2830 = scalar_lea.sflag [#allocation4], %s2829
          %s2831 = sand.u32 %s226, 1
          %s2832 = smul.addr %s2831, 256
          %s2833 = scalar_lea.vmem [#allocation3], %s2832
          %2834 = dma.done %s2830, 4096
        $region68: #{tpu_custom_call.1} parent=63 // pred_fallthru
          _
      $region64: #{tpu_custom_call.1} parent=5 // pred_fallthru
        _
    $region6: #{tpu_custom_call.1} parent=1 // loop_footer
      %s22 = sadd.s32 1, %s18
    $region7: #{tpu_custom_call.1} parent=1 // loop_footer_branch
      %17 = sbr.rel target = $region3
    $region8: #{tpu_custom_call.1} parent=1 // loop_exit
      _
    %2835 = vsyncpa [#allocation4], 1
    %s2836 = scalar_lea.sflag [#allocation4], 1
    %2837 = vsyncpa %s2836, 1

</llo_original>
